<compile_context>
chip_gen: v5e
topology: v5e:2x2
jax: 0.10.0
libtpu: 0.0.40
codegen_flags: <defaults>
</compile_context>

<pallas_src>
import functools

import numpy as np

import jax
import jax.numpy as jnp
from jax.experimental import pallas as pl
from jax.experimental.pallas import tpu as pltpu


def _round_up(x, m):
    return (x + m - 1) // m * m


# ----------------------------------------------------------------------------
# Wrapper-side helpers (XLA glue on raw inputs / numpy constants only)
# ----------------------------------------------------------------------------
def _im2col_nhwc(x_nchw, kh, kw, stride, pad):
    """(N,C,H,W) -> patch rows (N*Ho*Wo, kh*kw*C); single tiny NCHW->NHWC
    transpose on the raw input, trailing axes ordered (kh*kw, C) so the final
    reshape needs no transpose."""
    N, C, H, W = x_nchw.shape
    xh = jnp.transpose(x_nchw, (0, 2, 3, 1))
    xp = jnp.pad(xh, ((0, 0), (pad, pad), (pad, pad), (0, 0)))
    Ho = (H + 2 * pad - kh) // stride + 1
    Wo = (W + 2 * pad - kw) // stride + 1
    cols = [xp[:, i:i + stride * Ho:stride, j:j + stride * Wo:stride, :]
            for i in range(kh) for j in range(kw)]
    patches = jnp.stack(cols, axis=3)                 # (N, Ho, Wo, kh*kw, C)
    return patches.reshape(N * Ho * Wo, kh * kw * C), Ho, Wo


def _build_conv3x3_select(n_img, h, w):
    """Constant row-selection operator for a 3x3 / stride-1 / pad-1 conv on
    (n_img, h, w) latents laid out as flat rows r = n*h*w + i*w + j.
    S[(di*3+dj)*m + r_out, r_in] = 1 selects the shifted input row; taps that
    fall outside the image stay zero (the conv's zero padding)."""
    m = n_img * h * w
    S = np.zeros((9 * m, m), np.float32)
    for di in range(3):
        for dj in range(3):
            base = (di * 3 + dj) * m
            for n in range(n_img):
                for i in range(h):
                    ii = i + di - 1
                    if ii < 0 or ii >= h:
                        continue
                    for j in range(w):
                        jj = j + dj - 1
                        if jj < 0 or jj >= w:
                            continue
                        S[base + n * h * w + i * w + j,
                          n * h * w + ii * w + jj] = 1.0
    return S


# ----------------------------------------------------------------------------
# The single fused Pallas kernel
# ----------------------------------------------------------------------------
def _fused_forward_kernel(p_ref, ew_ref, eb_ref, n_ref, sel_ref, w9_ref,
                          epsb_ref, o_ref, *, m_src, np_lanes, k_taps,
                          sqrt_ac, sqrt_1mac, rate_over_n):
    # ---- VAE encoder: src + tgt patch rows through ONE MXU matmul ----------
    # SCALE_FACTOR is folded into ew/eb, so z_both IS the scaled latent.
    z_both = (jnp.dot(p_ref[...], ew_ref[...],
                      preferred_element_type=jnp.float32) + eb_ref[...])
    z_src = z_both[:m_src]                       # rows of x's latents
    z_tgt = z_both[m_src:2 * m_src]              # rows of tgt_tens' latents

    # ---- textural loss: MSELoss(reduction='sum')(z_src, z_tgt) -------------
    # (padded lanes are zero on both operands and contribute nothing)
    td = z_src - z_tgt
    textural = jnp.sum(td * td)

    # ---- semantic loss: forward diffusion + 3x3 eps-conv + noise MSE -------
    zn = (sqrt_ac * z_src + sqrt_1mac * n_ref[...]).astype(jnp.bfloat16)
    eps = jnp.zeros((m_src, np_lanes), jnp.float32)
    for s in range(k_taps):                      # static unroll: 9 conv taps
        sel_s = sel_ref[s * m_src:(s + 1) * m_src, :]       # (m, m) 0/1 bf16
        vs = jnp.dot(sel_s, zn, preferred_element_type=jnp.float32)
        eps = eps + jnp.dot(vs.astype(jnp.bfloat16),
                            w9_ref[s * np_lanes:(s + 1) * np_lanes, :],
                            preferred_element_type=jnp.float32)
    eps = eps + epsb_ref[...]
    d = eps - n_ref[...]
    semantic_ssq = jnp.sum(d * d)

    # ---- loss_mode == 2 combine, single SMEM scalar out ---------------------
    o_ref[0, 0] = rate_over_n * semantic_ssq - textural


def _fused_forward(p_pad, enc_w_pad, enc_b_pad, noise_pad, sel, w9_pad,
                   eps_b_pad, *, m_src, np_lanes, k_taps, sqrt_ac, sqrt_1mac,
                   semantic_rate, noise_elems):
    kernel = functools.partial(
        _fused_forward_kernel, m_src=m_src, np_lanes=np_lanes, k_taps=k_taps,
        sqrt_ac=sqrt_ac, sqrt_1mac=sqrt_1mac,
        rate_over_n=semantic_rate / float(noise_elems))
    out = pl.pallas_call(
        kernel,
        out_shape=jax.ShapeDtypeStruct((1, 1), jnp.float32),
        grid_spec=pltpu.PrefetchScalarGridSpec(
            num_scalar_prefetch=0,
            grid=(1,),
            in_specs=[
                pl.BlockSpec(p_pad.shape, lambda i: (0, 0)),
                pl.BlockSpec(enc_w_pad.shape, lambda i: (0, 0)),
                pl.BlockSpec(enc_b_pad.shape, lambda i: (0, 0)),
                pl.BlockSpec(noise_pad.shape, lambda i: (0, 0)),
                pl.BlockSpec(sel.shape, lambda i: (0, 0)),
                pl.BlockSpec(w9_pad.shape, lambda i: (0, 0)),
                pl.BlockSpec(eps_b_pad.shape, lambda i: (0, 0)),
            ],
            out_specs=pl.BlockSpec((1, 1), lambda i: (0, 0),
                                   memory_space=pltpu.MemorySpace.SMEM),
        ),
        compiler_params=pltpu.CompilerParams(
            dimension_semantics=("arbitrary",),
            # Resident tiles total < 2 MiB, comfortably inside every
            # generation's scoped VMEM (incl. v7x's 64 MiB physical budget).
            vmem_limit_bytes=32 * 1024 * 1024,
        ),
    )(p_pad, enc_w_pad, enc_b_pad, noise_pad, sel, w9_pad, eps_b_pad)
    return out[0, 0]


# ----------------------------------------------------------------------------
# Synthetic target_model (loss_mode=2, deterministic VAE sampling, eta=1.0)
# ----------------------------------------------------------------------------
class TargetModelPallas:
    SCALE_FACTOR = 0.18215  # LDM first-stage scale factor (folded into weights)

    def __init__(self, key, in_ch=3, latent_ch=4, semantic_rate=10000.0):
        k1, k2, k3, k4, k5 = jax.random.split(key, 5)
        self.in_ch = in_ch
        self.latent_ch = latent_ch
        self.semantic_rate = float(semantic_rate)

        # --- raw synthetic parameters (same distributions as before) --------
        # VAE first-stage encoder: 3x3 / stride-2 conv -> (mean || logvar)
        enc_w = 0.1 * jax.random.normal(k1, (2 * latent_ch, in_ch, 3, 3), jnp.float32)
        enc_b = 0.01 * jax.random.normal(k2, (2 * latent_ch,), jnp.float32)
        # TODO(synk): the full Stable Diffusion UNet eps-model has no clean
        # Pallas equivalent here; it is represented by a single 3x3 latent conv.
        eps_w = 0.1 * jax.random.normal(k3, (latent_ch, latent_ch, 3, 3), jnp.float32)
        eps_b = 0.01 * jax.random.normal(k4, (latent_ch,), jnp.float32)
        # TODO(synk): CLIP text encoder (get_learned_conditioning) replaced by a
        # deterministic learned per-latent-channel embedding folded into eps bias.
        cond = 0.05 * jax.random.normal(k5, (latent_ch,), jnp.float32)

        # fixed (deterministic) diffusion-schedule entry for p_losses
        self.sqrt_ac = 0.9
        self.sqrt_1mac = float((1.0 - 0.9 ** 2) ** 0.5)

        # --- pre-folded / pre-padded device constants ------------------------
        # Only the `mean` half of the encoder moments is kept (logvar is dead
        # under vae_sampling='deterministic'); SCALE_FACTOR is folded in so
        # get_first_stage_encoding becomes a no-op.
        KP = _round_up(9 * in_ch, 128)
        NP = _round_up(latent_ch, 128)
        self.KP, self.NP = KP, NP

        w_mean = np.asarray(enc_w[:latent_ch])            # (lc, in_ch, 3, 3)
        b_mean = np.asarray(enc_b[:latent_ch])
        # patch cols are ordered (kh*kw, C): row = (di*3+dj)*in_ch + cin
        w2 = self.SCALE_FACTOR * w_mean.transpose(2, 3, 1, 0).reshape(9 * in_ch, latent_ch)
        enc_w_pad = np.zeros((KP, NP), np.float32)
        enc_w_pad[:9 * in_ch, :latent_ch] = w2
        enc_b_pad = np.zeros((1, NP), np.float32)
        enc_b_pad[0, :latent_ch] = self.SCALE_FACTOR * b_mean
        self.enc_w_pad = jnp.asarray(enc_w_pad, jnp.bfloat16)
        self.enc_b_pad = jnp.asarray(enc_b_pad, jnp.float32)

        # eps conv weights stacked per tap: w9[s*NP + cin, cout] = eps_w[cout, cin, di, dj]
        eps_w_np = np.asarray(eps_w)
        w9 = np.zeros((9 * NP, NP), np.float32)
        for di in range(3):
            for dj in range(3):
                s = di * 3 + dj
                w9[s * NP:s * NP + latent_ch, :latent_ch] = eps_w_np[:, :, di, dj].T
        self.eps_w9_pad = jnp.asarray(w9, jnp.bfloat16)
        eps_b_pad = np.zeros((1, NP), np.float32)
        eps_b_pad[0, :latent_ch] = np.asarray(eps_b + cond)   # conditioning folded in
        self.eps_b_pad = jnp.asarray(eps_b_pad, jnp.float32)

    def forward(self, x, tgt_tens, noise):
        N, C, H, W = x.shape
        lc = self.latent_ch

        # --- encode_first_stage for x and tgt_tens, batched through ONE matmul
        both = jnp.concatenate([x, tgt_tens], axis=0).astype(jnp.bfloat16)
        patches, Ho, Wo = _im2col_nhwc(both, 3, 3, 2, 1)       # (2*N*Ho*Wo, 27)
        m_src = N * Ho * Wo
        assert m_src % 8 == 0 and 2 * m_src <= 1024, (
            "toy single-tile kernel; retile the M axis for larger shapes")
        # TODO(synk): for SD-sized shapes split the row axis over a grid (and the
        # two TensorCores on v7x) and round KP/NP to 256 for the v6e/v7x MXU.
        p_pad = jnp.pad(patches, ((0, 0), (0, self.KP - patches.shape[1])))

        # --- noise in latent NHWC-flat row layout, padded lanes are zero ------
        # (single grid step => one small DMA; keeps the in-kernel math lane-wide)
        n_flat = noise.transpose(0, 2, 3, 1).reshape(m_src, lc).astype(jnp.float32)
        n_pad = jnp.pad(n_flat, ((0, 0), (0, self.NP - lc)))

        # --- constant shift/mask selection operator for the eps 3x3 conv ------
        sel = jnp.asarray(_build_conv3x3_select(N, Ho, Wo), jnp.bfloat16)

        # One pallas_call: encoder matmul + textural SSQ + forward diffusion
        # + eps conv + noise MSE + loss_mode==2 combine.
        return _fused_forward(
            p_pad, self.enc_w_pad, self.enc_b_pad, n_pad, sel,
            self.eps_w9_pad, self.eps_b_pad,
            m_src=m_src, np_lanes=self.NP, k_taps=9,
            sqrt_ac=self.sqrt_ac, sqrt_1mac=self.sqrt_1mac,
            semantic_rate=self.semantic_rate, noise_elems=int(noise.size))


if __name__ == "__main__":
    key = jax.random.PRNGKey(0)
    kx, kt, kn, kp = jax.random.split(key, 4)

    x = jax.random.normal(kx, (2, 3, 16, 16), jnp.float32)      # input image
    tgt = jax.random.normal(kt, (2, 3, 16, 16), jnp.float32)    # self.tgt_tens
    model = TargetModelPallas(kp)
    # deterministic stand-in for the randn noise drawn inside p_losses
    noise = jax.random.normal(kn, (2, model.latent_ch, 8, 8), jnp.float32)

    loss = jax.jit(model.forward)(x, tgt, noise)
    jax.block_until_ready(loss)
    assert loss.shape == () and bool(jnp.isfinite(loss))
    print("KERNEL_OK")
</pallas_src>

<mosaic_0001>
module attributes {stable_mosaic.version = 11 : i64} {
  func.func @_fused_forward_kernel(%arg0: i32, %arg1: memref<256x128xbf16, #tpu.memory_space<vmem>>, %arg2: memref<128x128xbf16, #tpu.memory_space<vmem>>, %arg3: memref<1x128xf32, #tpu.memory_space<vmem>>, %arg4: memref<128x128xf32, #tpu.memory_space<vmem>>, %arg5: memref<1152x128xbf16, #tpu.memory_space<vmem>>, %arg6: memref<1152x128xbf16, #tpu.memory_space<vmem>>, %arg7: memref<1x128xf32, #tpu.memory_space<vmem>>, %arg8: memref<1x1xf32, #tpu.memory_space<smem>>) attributes {dimension_semantics = [#tpu.dimension_semantics<arbitrary>], iteration_bounds = array<i64: 1>, scalar_prefetch = 0 : i64, scratch_operands = 0 : i64, tpu.core_type = #tpu.core_type<tc>, window_params = [{pipeline_mode = #tpu.pipeline_mode<synchronous>, transform_indices = @transform_0, window_bounds = array<i64: 256, 128>}, {pipeline_mode = #tpu.pipeline_mode<synchronous>, transform_indices = @transform_1, window_bounds = array<i64: 128, 128>}, {pipeline_mode = #tpu.pipeline_mode<synchronous>, transform_indices = @transform_2, window_bounds = array<i64: 1, 128>}, {pipeline_mode = #tpu.pipeline_mode<synchronous>, transform_indices = @transform_3, window_bounds = array<i64: 128, 128>}, {pipeline_mode = #tpu.pipeline_mode<synchronous>, transform_indices = @transform_4, window_bounds = array<i64: 1152, 128>}, {pipeline_mode = #tpu.pipeline_mode<synchronous>, transform_indices = @transform_5, window_bounds = array<i64: 1152, 128>}, {pipeline_mode = #tpu.pipeline_mode<synchronous>, transform_indices = @transform_6, window_bounds = array<i64: 1, 128>}, {transform_indices = @transform_7, window_bounds = array<i64: 1, 1>}]} {
    %c0 = arith.constant 0 : index
    %c0_0 = arith.constant 0 : index
    %0 = vector.load %arg1[%c0, %c0_0] : memref<256x128xbf16, #tpu.memory_space<vmem>>, vector<256x128xbf16>
    %c0_1 = arith.constant 0 : index
    %c0_2 = arith.constant 0 : index
    %1 = vector.load %arg2[%c0_1, %c0_2] : memref<128x128xbf16, #tpu.memory_space<vmem>>, vector<128x128xbf16>
    %cst = arith.constant dense<0.000000e+00> : vector<256x128xf32>
    %2 = tpu.matmul %0, %1, %cst {dimension_numbers = #tpu.dot_dimension_numbers<[1], [0], [0], [1], [0, 0, 1, 1], [], []>} : vector<256x128xbf16>, vector<128x128xbf16>, vector<256x128xf32> -> vector<256x128xf32>
    %c0_3 = arith.constant 0 : index
    %c0_4 = arith.constant 0 : index
    %3 = vector.load %arg3[%c0_3, %c0_4] : memref<1x128xf32, #tpu.memory_space<vmem>>, vector<1x128xf32>
    %4 = vector.broadcast %3 : vector<1x128xf32> to vector<256x128xf32>
    %5 = arith.addf %2, %4 : vector<256x128xf32>
    %6 = vector.extract_strided_slice %5 {offsets = [0, 0], sizes = [128, 128], strides = [1, 1]} : vector<256x128xf32> to vector<128x128xf32>
    %7 = vector.extract_strided_slice %5 {offsets = [128, 0], sizes = [128, 128], strides = [1, 1]} : vector<256x128xf32> to vector<128x128xf32>
    %8 = arith.subf %6, %7 : vector<128x128xf32>
    %9 = arith.mulf %8, %8 : vector<128x128xf32>
    %10 = vector.shape_cast %9 : vector<128x128xf32> to vector<1x128x128xf32>
    %cst_5 = arith.constant dense<0.000000e+00> : vector<1xf32>
    %11 = vector.multi_reduction <add>, %10, %cst_5 [1, 2] : vector<1x128x128xf32> to vector<1xf32>
    %12 = vector.shape_cast %11 : vector<1xf32> to vector<1x1x1xf32>
    %13 = vector.extract %12[0, 0, 0] : f32 from vector<1x1x1xf32>
    %cst_6 = arith.constant 0.899999976 : f32
    %14 = vector.broadcast %cst_6 : f32 to vector<128x128xf32>
    %15 = arith.mulf %14, %6 : vector<128x128xf32>
    %c0_7 = arith.constant 0 : index
    %c0_8 = arith.constant 0 : index
    %16 = vector.load %arg4[%c0_7, %c0_8] : memref<128x128xf32, #tpu.memory_space<vmem>>, vector<128x128xf32>
    %cst_9 = arith.constant 0.4358899 : f32
    %17 = vector.broadcast %cst_9 : f32 to vector<128x128xf32>
    %18 = arith.mulf %17, %16 : vector<128x128xf32>
    %19 = arith.addf %15, %18 : vector<128x128xf32>
    %20 = arith.truncf %19 : vector<128x128xf32> to vector<128x128xbf16>
    %cst_10 = arith.constant 0.000000e+00 : f32
    %21 = vector.broadcast %cst_10 : f32 to vector<128x128xf32>
    %c0_11 = arith.constant 0 : index
    %c0_12 = arith.constant 0 : index
    %22 = vector.load %arg5[%c0_11, %c0_12] : memref<1152x128xbf16, #tpu.memory_space<vmem>>, vector<128x128xbf16>
    %cst_13 = arith.constant dense<0.000000e+00> : vector<128x128xf32>
    %23 = tpu.matmul %22, %20, %cst_13 {dimension_numbers = #tpu.dot_dimension_numbers<[1], [0], [0], [1], [0, 0, 1, 1], [], []>} : vector<128x128xbf16>, vector<128x128xbf16>, vector<128x128xf32> -> vector<128x128xf32>
    %24 = arith.truncf %23 : vector<128x128xf32> to vector<128x128xbf16>
    %c0_14 = arith.constant 0 : index
    %c0_15 = arith.constant 0 : index
    %25 = vector.load %arg6[%c0_14, %c0_15] : memref<1152x128xbf16, #tpu.memory_space<vmem>>, vector<128x128xbf16>
    %cst_16 = arith.constant dense<0.000000e+00> : vector<128x128xf32>
    %26 = tpu.matmul %24, %25, %cst_16 {dimension_numbers = #tpu.dot_dimension_numbers<[1], [0], [0], [1], [0, 0, 1, 1], [], []>} : vector<128x128xbf16>, vector<128x128xbf16>, vector<128x128xf32> -> vector<128x128xf32>
    %27 = arith.addf %21, %26 : vector<128x128xf32>
    %c128 = arith.constant 128 : index
    %c0_17 = arith.constant 0 : index
    %28 = vector.load %arg5[%c128, %c0_17] : memref<1152x128xbf16, #tpu.memory_space<vmem>>, vector<128x128xbf16>
    %cst_18 = arith.constant dense<0.000000e+00> : vector<128x128xf32>
    %29 = tpu.matmul %28, %20, %cst_18 {dimension_numbers = #tpu.dot_dimension_numbers<[1], [0], [0], [1], [0, 0, 1, 1], [], []>} : vector<128x128xbf16>, vector<128x128xbf16>, vector<128x128xf32> -> vector<128x128xf32>
    %30 = arith.truncf %29 : vector<128x128xf32> to vector<128x128xbf16>
    %c128_19 = arith.constant 128 : index
    %c0_20 = arith.constant 0 : index
    %31 = vector.load %arg6[%c128_19, %c0_20] : memref<1152x128xbf16, #tpu.memory_space<vmem>>, vector<128x128xbf16>
    %cst_21 = arith.constant dense<0.000000e+00> : vector<128x128xf32>
    %32 = tpu.matmul %30, %31, %cst_21 {dimension_numbers = #tpu.dot_dimension_numbers<[1], [0], [0], [1], [0, 0, 1, 1], [], []>} : vector<128x128xbf16>, vector<128x128xbf16>, vector<128x128xf32> -> vector<128x128xf32>
    %33 = arith.addf %27, %32 : vector<128x128xf32>
    %c256 = arith.constant 256 : index
    %c0_22 = arith.constant 0 : index
    %34 = vector.load %arg5[%c256, %c0_22] : memref<1152x128xbf16, #tpu.memory_space<vmem>>, vector<128x128xbf16>
    %cst_23 = arith.constant dense<0.000000e+00> : vector<128x128xf32>
    %35 = tpu.matmul %34, %20, %cst_23 {dimension_numbers = #tpu.dot_dimension_numbers<[1], [0], [0], [1], [0, 0, 1, 1], [], []>} : vector<128x128xbf16>, vector<128x128xbf16>, vector<128x128xf32> -> vector<128x128xf32>
    %36 = arith.truncf %35 : vector<128x128xf32> to vector<128x128xbf16>
    %c256_24 = arith.constant 256 : index
    %c0_25 = arith.constant 0 : index
    %37 = vector.load %arg6[%c256_24, %c0_25] : memref<1152x128xbf16, #tpu.memory_space<vmem>>, vector<128x128xbf16>
    %cst_26 = arith.constant dense<0.000000e+00> : vector<128x128xf32>
    %38 = tpu.matmul %36, %37, %cst_26 {dimension_numbers = #tpu.dot_dimension_numbers<[1], [0], [0], [1], [0, 0, 1, 1], [], []>} : vector<128x128xbf16>, vector<128x128xbf16>, vector<128x128xf32> -> vector<128x128xf32>
    %39 = arith.addf %33, %38 : vector<128x128xf32>
    %c384 = arith.constant 384 : index
    %c0_27 = arith.constant 0 : index
    %40 = vector.load %arg5[%c384, %c0_27] : memref<1152x128xbf16, #tpu.memory_space<vmem>>, vector<128x128xbf16>
    %cst_28 = arith.constant dense<0.000000e+00> : vector<128x128xf32>
    %41 = tpu.matmul %40, %20, %cst_28 {dimension_numbers = #tpu.dot_dimension_numbers<[1], [0], [0], [1], [0, 0, 1, 1], [], []>} : vector<128x128xbf16>, vector<128x128xbf16>, vector<128x128xf32> -> vector<128x128xf32>
    %42 = arith.truncf %41 : vector<128x128xf32> to vector<128x128xbf16>
    %c384_29 = arith.constant 384 : index
    %c0_30 = arith.constant 0 : index
    %43 = vector.load %arg6[%c384_29, %c0_30] : memref<1152x128xbf16, #tpu.memory_space<vmem>>, vector<128x128xbf16>
    %cst_31 = arith.constant dense<0.000000e+00> : vector<128x128xf32>
    %44 = tpu.matmul %42, %43, %cst_31 {dimension_numbers = #tpu.dot_dimension_numbers<[1], [0], [0], [1], [0, 0, 1, 1], [], []>} : vector<128x128xbf16>, vector<128x128xbf16>, vector<128x128xf32> -> vector<128x128xf32>
    %45 = arith.addf %39, %44 : vector<128x128xf32>
    %c512 = arith.constant 512 : index
    %c0_32 = arith.constant 0 : index
    %46 = vector.load %arg5[%c512, %c0_32] : memref<1152x128xbf16, #tpu.memory_space<vmem>>, vector<128x128xbf16>
    %cst_33 = arith.constant dense<0.000000e+00> : vector<128x128xf32>
    %47 = tpu.matmul %46, %20, %cst_33 {dimension_numbers = #tpu.dot_dimension_numbers<[1], [0], [0], [1], [0, 0, 1, 1], [], []>} : vector<128x128xbf16>, vector<128x128xbf16>, vector<128x128xf32> -> vector<128x128xf32>
    %48 = arith.truncf %47 : vector<128x128xf32> to vector<128x128xbf16>
    %c512_34 = arith.constant 512 : index
    %c0_35 = arith.constant 0 : index
    %49 = vector.load %arg6[%c512_34, %c0_35] : memref<1152x128xbf16, #tpu.memory_space<vmem>>, vector<128x128xbf16>
    %cst_36 = arith.constant dense<0.000000e+00> : vector<128x128xf32>
    %50 = tpu.matmul %48, %49, %cst_36 {dimension_numbers = #tpu.dot_dimension_numbers<[1], [0], [0], [1], [0, 0, 1, 1], [], []>} : vector<128x128xbf16>, vector<128x128xbf16>, vector<128x128xf32> -> vector<128x128xf32>
    %51 = arith.addf %45, %50 : vector<128x128xf32>
    %c640 = arith.constant 640 : index
    %c0_37 = arith.constant 0 : index
    %52 = vector.load %arg5[%c640, %c0_37] : memref<1152x128xbf16, #tpu.memory_space<vmem>>, vector<128x128xbf16>
    %cst_38 = arith.constant dense<0.000000e+00> : vector<128x128xf32>
    %53 = tpu.matmul %52, %20, %cst_38 {dimension_numbers = #tpu.dot_dimension_numbers<[1], [0], [0], [1], [0, 0, 1, 1], [], []>} : vector<128x128xbf16>, vector<128x128xbf16>, vector<128x128xf32> -> vector<128x128xf32>
    %54 = arith.truncf %53 : vector<128x128xf32> to vector<128x128xbf16>
    %c640_39 = arith.constant 640 : index
    %c0_40 = arith.constant 0 : index
    %55 = vector.load %arg6[%c640_39, %c0_40] : memref<1152x128xbf16, #tpu.memory_space<vmem>>, vector<128x128xbf16>
    %cst_41 = arith.constant dense<0.000000e+00> : vector<128x128xf32>
    %56 = tpu.matmul %54, %55, %cst_41 {dimension_numbers = #tpu.dot_dimension_numbers<[1], [0], [0], [1], [0, 0, 1, 1], [], []>} : vector<128x128xbf16>, vector<128x128xbf16>, vector<128x128xf32> -> vector<128x128xf32>
    %57 = arith.addf %51, %56 : vector<128x128xf32>
    %c768 = arith.constant 768 : index
    %c0_42 = arith.constant 0 : index
    %58 = vector.load %arg5[%c768, %c0_42] : memref<1152x128xbf16, #tpu.memory_space<vmem>>, vector<128x128xbf16>
    %cst_43 = arith.constant dense<0.000000e+00> : vector<128x128xf32>
    %59 = tpu.matmul %58, %20, %cst_43 {dimension_numbers = #tpu.dot_dimension_numbers<[1], [0], [0], [1], [0, 0, 1, 1], [], []>} : vector<128x128xbf16>, vector<128x128xbf16>, vector<128x128xf32> -> vector<128x128xf32>
    %60 = arith.truncf %59 : vector<128x128xf32> to vector<128x128xbf16>
    %c768_44 = arith.constant 768 : index
    %c0_45 = arith.constant 0 : index
    %61 = vector.load %arg6[%c768_44, %c0_45] : memref<1152x128xbf16, #tpu.memory_space<vmem>>, vector<128x128xbf16>
    %cst_46 = arith.constant dense<0.000000e+00> : vector<128x128xf32>
    %62 = tpu.matmul %60, %61, %cst_46 {dimension_numbers = #tpu.dot_dimension_numbers<[1], [0], [0], [1], [0, 0, 1, 1], [], []>} : vector<128x128xbf16>, vector<128x128xbf16>, vector<128x128xf32> -> vector<128x128xf32>
    %63 = arith.addf %57, %62 : vector<128x128xf32>
    %c896 = arith.constant 896 : index
    %c0_47 = arith.constant 0 : index
    %64 = vector.load %arg5[%c896, %c0_47] : memref<1152x128xbf16, #tpu.memory_space<vmem>>, vector<128x128xbf16>
    %cst_48 = arith.constant dense<0.000000e+00> : vector<128x128xf32>
    %65 = tpu.matmul %64, %20, %cst_48 {dimension_numbers = #tpu.dot_dimension_numbers<[1], [0], [0], [1], [0, 0, 1, 1], [], []>} : vector<128x128xbf16>, vector<128x128xbf16>, vector<128x128xf32> -> vector<128x128xf32>
    %66 = arith.truncf %65 : vector<128x128xf32> to vector<128x128xbf16>
    %c896_49 = arith.constant 896 : index
    %c0_50 = arith.constant 0 : index
    %67 = vector.load %arg6[%c896_49, %c0_50] : memref<1152x128xbf16, #tpu.memory_space<vmem>>, vector<128x128xbf16>
    %cst_51 = arith.constant dense<0.000000e+00> : vector<128x128xf32>
    %68 = tpu.matmul %66, %67, %cst_51 {dimension_numbers = #tpu.dot_dimension_numbers<[1], [0], [0], [1], [0, 0, 1, 1], [], []>} : vector<128x128xbf16>, vector<128x128xbf16>, vector<128x128xf32> -> vector<128x128xf32>
    %69 = arith.addf %63, %68 : vector<128x128xf32>
    %c1024 = arith.constant 1024 : index
    %c0_52 = arith.constant 0 : index
    %70 = vector.load %arg5[%c1024, %c0_52] : memref<1152x128xbf16, #tpu.memory_space<vmem>>, vector<128x128xbf16>
    %cst_53 = arith.constant dense<0.000000e+00> : vector<128x128xf32>
    %71 = tpu.matmul %70, %20, %cst_53 {dimension_numbers = #tpu.dot_dimension_numbers<[1], [0], [0], [1], [0, 0, 1, 1], [], []>} : vector<128x128xbf16>, vector<128x128xbf16>, vector<128x128xf32> -> vector<128x128xf32>
    %72 = arith.truncf %71 : vector<128x128xf32> to vector<128x128xbf16>
    %c1024_54 = arith.constant 1024 : index
    %c0_55 = arith.constant 0 : index
    %73 = vector.load %arg6[%c1024_54, %c0_55] : memref<1152x128xbf16, #tpu.memory_space<vmem>>, vector<128x128xbf16>
    %cst_56 = arith.constant dense<0.000000e+00> : vector<128x128xf32>
    %74 = tpu.matmul %72, %73, %cst_56 {dimension_numbers = #tpu.dot_dimension_numbers<[1], [0], [0], [1], [0, 0, 1, 1], [], []>} : vector<128x128xbf16>, vector<128x128xbf16>, vector<128x128xf32> -> vector<128x128xf32>
    %75 = arith.addf %69, %74 : vector<128x128xf32>
    %c0_57 = arith.constant 0 : index
    %c0_58 = arith.constant 0 : index
    %76 = vector.load %arg7[%c0_57, %c0_58] : memref<1x128xf32, #tpu.memory_space<vmem>>, vector<1x128xf32>
    %77 = vector.broadcast %76 : vector<1x128xf32> to vector<128x128xf32>
    %78 = arith.addf %75, %77 : vector<128x128xf32>
    %c0_59 = arith.constant 0 : index
    %c0_60 = arith.constant 0 : index
    %79 = vector.load %arg4[%c0_59, %c0_60] : memref<128x128xf32, #tpu.memory_space<vmem>>, vector<128x128xf32>
    %80 = arith.subf %78, %79 : vector<128x128xf32>
    %81 = arith.mulf %80, %80 : vector<128x128xf32>
    %82 = vector.shape_cast %81 : vector<128x128xf32> to vector<1x128x128xf32>
    %cst_61 = arith.constant dense<0.000000e+00> : vector<1xf32>
    %83 = vector.multi_reduction <add>, %82, %cst_61 [1, 2] : vector<1x128x128xf32> to vector<1xf32>
    %84 = vector.shape_cast %83 : vector<1xf32> to vector<1x1x1xf32>
    %85 = vector.extract %84[0, 0, 0] : f32 from vector<1x1x1xf32>
    %cst_62 = arith.constant 19.53125 : f32
    %86 = arith.mulf %cst_62, %85 : f32
    %87 = arith.subf %86, %13 : f32
    %c0_63 = arith.constant 0 : index
    %c0_64 = arith.constant 0 : index
    %88 = memref.load %arg8[%c0_63, %c0_64] : memref<1x1xf32, #tpu.memory_space<smem>>
    memref.store %87, %arg8[%c0_63, %c0_64] : memref<1x1xf32, #tpu.memory_space<smem>>
    return
  }
  func.func @transform_0(%arg0: i32) -> (i32, i32) {
    %c0_i32 = arith.constant 0 : i32
    %c0_i32_0 = arith.constant 0 : i32
    %c0_i32_1 = arith.constant 0 : i32
    return %c0_i32, %c0_i32_0 : i32, i32
  }
  func.func @transform_1(%arg0: i32) -> (i32, i32) {
    %c0_i32 = arith.constant 0 : i32
    %c0_i32_0 = arith.constant 0 : i32
    %c0_i32_1 = arith.constant 0 : i32
    return %c0_i32, %c0_i32_0 : i32, i32
  }
  func.func @transform_2(%arg0: i32) -> (i32, i32) {
    %c0_i32 = arith.constant 0 : i32
    %c0_i32_0 = arith.constant 0 : i32
    %c0_i32_1 = arith.constant 0 : i32
    return %c0_i32, %c0_i32_0 : i32, i32
  }
  func.func @transform_3(%arg0: i32) -> (i32, i32) {
    %c0_i32 = arith.constant 0 : i32
    %c0_i32_0 = arith.constant 0 : i32
    %c0_i32_1 = arith.constant 0 : i32
    return %c0_i32, %c0_i32_0 : i32, i32
  }
  func.func @transform_4(%arg0: i32) -> (i32, i32) {
    %c0_i32 = arith.constant 0 : i32
    %c0_i32_0 = arith.constant 0 : i32
    %c0_i32_1 = arith.constant 0 : i32
    return %c0_i32, %c0_i32_0 : i32, i32
  }
  func.func @transform_5(%arg0: i32) -> (i32, i32) {
    %c0_i32 = arith.constant 0 : i32
    %c0_i32_0 = arith.constant 0 : i32
    %c0_i32_1 = arith.constant 0 : i32
    return %c0_i32, %c0_i32_0 : i32, i32
  }
  func.func @transform_6(%arg0: i32) -> (i32, i32) {
    %c0_i32 = arith.constant 0 : i32
    %c0_i32_0 = arith.constant 0 : i32
    %c0_i32_1 = arith.constant 0 : i32
    return %c0_i32, %c0_i32_0 : i32, i32
  }
  func.func @transform_7(%arg0: i32) -> (i32, i32) {
    %c0_i32 = arith.constant 0 : i32
    %c0_i32_0 = arith.constant 0 : i32
    %c0_i32_1 = arith.constant 0 : i32
    return %c0_i32, %c0_i32_0 : i32, i32
  }
}

</mosaic_0001>

<llo_original>
// kernel: forward.1
$region0: #{forward.1}
  #allocation0 [shape = 'u32[]', space=smem, size = 0x4, offset = 0x4, fixed_abs, tag = 'smem constant byte address 0x4 - core index']
  #allocation1 [shape = 'u32[72,128]{1,0:T(1,128)}', space=vmem, size = 0x9000, scoped, tag = 'internal scratch']
  %s0 = inlined_call_operand.vmem [shape: bf16[256,128], index: 0, kind: input, shape index: {}]
  %s1 = inlined_call_operand.vmem [shape: bf16[128,128], index: 1, kind: input, shape index: {}]
  %s2 = inlined_call_operand.vmem [shape: f32[1,128], index: 2, kind: input, shape index: {}]
  %s3 = inlined_call_operand.vmem [shape: f32[128,128], index: 3, kind: input, shape index: {}]
  %s4 = inlined_call_operand.vmem [shape: bf16[1152,128], index: 4, kind: input, shape index: {}]
  %s5 = inlined_call_operand.vmem [shape: bf16[1152,128], index: 5, kind: input, shape index: {}]
  %s6 = inlined_call_operand.vmem [shape: f32[1,128], index: 6, kind: input, shape index: {}]
  %s7 = inlined_call_operand.hbm [shape: f32[1,1], index: 7, kind: output, shape index: {}]
  %s8 = sld [smem:[#allocation0]]
  $region38: #{forward.1} parent=0
    _
  %s10 = ssub.s32 1, %s8
  %s11 = scalar_select 0, %s10, %s8
  $region1: #{forward.1} parent=0
    #allocation2 [shape = 'u8[512]{0}', space=smem, size = 0x200, scoped, tag = 'output window, operand 0, single buffered']
    #allocation3 [shape = 's32[1]{0}', space=sflag, size = 0x4, scoped, tag = 'scoped memory for forward.1']
    %12 = vsyncpa [#allocation3], 0
    // Predicated region
    $region2: #{forward.1} parent=1 // pred_check
      _
    $region3: #{forward.1} parent=1 // pred_check_branch
      %14 = sbr.rel (0) target = $region5
    $region4: #{forward.1} parent=1 // pred_region
      _
    $region5: #{forward.1} parent=1 // pred_fallthru
      _
    // Predicated region
    $region6: #{forward.1} parent=1 // pred_check
      _
    $region7: #{forward.1} parent=1 // pred_check_branch
      %16 = sbr.rel (0) target = $region9
    $region8: #{forward.1} parent=1 // pred_region
      _
    $region9: #{forward.1} parent=1 // pred_fallthru
      _
    // Predicated region
    $region10: #{forward.1} parent=1 // pred_check
      _
    $region11: #{forward.1} parent=1 // pred_check_branch
      %18 = sbr.rel (0) target = $region13
    $region12: #{forward.1} parent=1 // pred_region
      _
    $region13: #{forward.1} parent=1 // pred_fallthru
      _
    // Predicated region
    $region14: #{forward.1} parent=1 // pred_check
      _
    $region15: #{forward.1} parent=1 // pred_check_branch
      %20 = sbr.rel (0) target = $region17
    $region16: #{forward.1} parent=1 // pred_region
      _
    $region17: #{forward.1} parent=1 // pred_fallthru
      _
    // Predicated region
    $region18: #{forward.1} parent=1 // pred_check
      _
    $region19: #{forward.1} parent=1 // pred_check_branch
      %22 = sbr.rel (0) target = $region21
    $region20: #{forward.1} parent=1 // pred_region
      _
    $region21: #{forward.1} parent=1 // pred_fallthru
      _
    // Predicated region
    $region22: #{forward.1} parent=1 // pred_check
      _
    $region23: #{forward.1} parent=1 // pred_check_branch
      %24 = sbr.rel (0) target = $region25
    $region24: #{forward.1} parent=1 // pred_region
      _
    $region25: #{forward.1} parent=1 // pred_fallthru
      _
    // Predicated region
    $region26: #{forward.1} parent=1 // pred_check
      _
    $region27: #{forward.1} parent=1 // pred_check_branch
      %26 = sbr.rel (0) target = $region29
    $region28: #{forward.1} parent=1 // pred_region
      _
    $region29: #{forward.1} parent=1 // pred_fallthru
      _
    %v27 = vld [vmem:[%s0] sm:$0xf]
    %v28 = vld [vmem:[%s0 + $0x4] sm:$0xf]
    %v29 = vld [vmem:[%s0 + $0x8] sm:$0xf]
    %v30 = vld [vmem:[%s0 + $0xc] sm:$0xf]
    %v31 = vld [vmem:[%s0 + $0x10] sm:$0xf]
    %v32 = vld [vmem:[%s0 + $0x14] sm:$0xf]
    %v33 = vld [vmem:[%s0 + $0x18] sm:$0xf]
    %v34 = vld [vmem:[%s0 + $0x1c] sm:$0xf]
    %v35 = vld [vmem:[%s0 + $0x20] sm:$0xf]
    %v36 = vld [vmem:[%s0 + $0x24] sm:$0xf]
    %v37 = vld [vmem:[%s0 + $0x28] sm:$0xf]
    %v38 = vld [vmem:[%s0 + $0x2c] sm:$0xf]
    %v39 = vld [vmem:[%s0 + $0x30] sm:$0xf]
    %v40 = vld [vmem:[%s0 + $0x34] sm:$0xf]
    %v41 = vld [vmem:[%s0 + $0x38] sm:$0xf]
    %v42 = vld [vmem:[%s0 + $0x3c] sm:$0xf]
    %v43 = vld [vmem:[%s0 + $0x40] sm:$0xf]
    %v44 = vld [vmem:[%s0 + $0x44] sm:$0xf]
    %v45 = vld [vmem:[%s0 + $0x48] sm:$0xf]
    %v46 = vld [vmem:[%s0 + $0x4c] sm:$0xf]
    %v47 = vld [vmem:[%s0 + $0x50] sm:$0xf]
    %v48 = vld [vmem:[%s0 + $0x54] sm:$0xf]
    %v49 = vld [vmem:[%s0 + $0x58] sm:$0xf]
    %v50 = vld [vmem:[%s0 + $0x5c] sm:$0xf]
    %v51 = vld [vmem:[%s0 + $0x60] sm:$0xf]
    %v52 = vld [vmem:[%s0 + $0x64] sm:$0xf]
    %v53 = vld [vmem:[%s0 + $0x68] sm:$0xf]
    %v54 = vld [vmem:[%s0 + $0x6c] sm:$0xf]
    %v55 = vld [vmem:[%s0 + $0x70] sm:$0xf]
    %v56 = vld [vmem:[%s0 + $0x74] sm:$0xf]
    %v57 = vld [vmem:[%s0 + $0x78] sm:$0xf]
    %v58 = vld [vmem:[%s0 + $0x7c] sm:$0xf]
    %v59 = vld [vmem:[%s1] sm:$0xf]
    %v60 = vld [vmem:[%s1 + $0x4] sm:$0xf]
    %v61 = vld [vmem:[%s1 + $0x8] sm:$0xf]
    %v62 = vld [vmem:[%s1 + $0xc] sm:$0xf]
    %v63 = vld [vmem:[%s1 + $0x10] sm:$0xf]
    %v64 = vld [vmem:[%s1 + $0x14] sm:$0xf]
    %v65 = vld [vmem:[%s1 + $0x18] sm:$0xf]
    %v66 = vld [vmem:[%s1 + $0x1c] sm:$0xf]
    %v67 = vld [vmem:[%s1 + $0x20] sm:$0xf]
    %v68 = vld [vmem:[%s1 + $0x24] sm:$0xf]
    %v69 = vld [vmem:[%s1 + $0x28] sm:$0xf]
    %v70 = vld [vmem:[%s1 + $0x2c] sm:$0xf]
    %v71 = vld [vmem:[%s1 + $0x30] sm:$0xf]
    %v72 = vld [vmem:[%s1 + $0x34] sm:$0xf]
    %v73 = vld [vmem:[%s1 + $0x38] sm:$0xf]
    %v74 = vld [vmem:[%s1 + $0x3c] sm:$0xf]
    %v75 = vld [vmem:[%s2] sm:$0x1]
    %v77 = vperm.slane %v75, 0
    %v111 = vunpack.c.l.b16 %v27
    %v112 = vunpack.c.l.b16 %v28
    %v113 = vunpack.c.l.b16 %v29
    %v114 = vunpack.c.l.b16 %v30
    %v115 = vunpack.c.l.b16 %v31
    %v116 = vunpack.c.l.b16 %v32
    %v117 = vunpack.c.l.b16 %v33
    %v118 = vunpack.c.l.b16 %v34
    %v119 = vunpack.c.l.b16 %v35
    %v120 = vunpack.c.l.b16 %v36
    %v121 = vunpack.c.l.b16 %v37
    %v122 = vunpack.c.l.b16 %v38
    %v123 = vunpack.c.l.b16 %v39
    %v124 = vunpack.c.l.b16 %v40
    %v125 = vunpack.c.l.b16 %v41
    %v126 = vunpack.c.l.b16 %v42
    %v127 = vunpack.c.l.b16 %v43
    %v128 = vunpack.c.l.b16 %v44
    %v129 = vunpack.c.l.b16 %v45
    %v130 = vunpack.c.l.b16 %v46
    %v131 = vunpack.c.l.b16 %v47
    %v132 = vunpack.c.l.b16 %v48
    %v133 = vunpack.c.l.b16 %v49
    %v134 = vunpack.c.l.b16 %v50
    %v135 = vunpack.c.l.b16 %v51
    %v136 = vunpack.c.l.b16 %v52
    %v137 = vunpack.c.l.b16 %v53
    %v138 = vunpack.c.l.b16 %v54
    %v139 = vunpack.c.l.b16 %v55
    %v140 = vunpack.c.l.b16 %v56
    %v141 = vunpack.c.l.b16 %v57
    %v142 = vunpack.c.l.b16 %v58
    %v143 = vpack.c.b16 %v112, %v111
    %v144 = vpack.c.b16 %v114, %v113
    %v145 = vpack.c.b16 %v116, %v115
    %v146 = vpack.c.b16 %v118, %v117
    %v147 = vpack.c.b16 %v120, %v119
    %v148 = vpack.c.b16 %v122, %v121
    %v149 = vpack.c.b16 %v124, %v123
    %v150 = vpack.c.b16 %v126, %v125
    %v151 = vpack.c.b16 %v128, %v127
    %v152 = vpack.c.b16 %v130, %v129
    %v153 = vpack.c.b16 %v132, %v131
    %v154 = vpack.c.b16 %v134, %v133
    %v155 = vpack.c.b16 %v136, %v135
    %v156 = vpack.c.b16 %v138, %v137
    %v157 = vpack.c.b16 %v140, %v139
    %v158 = vpack.c.b16 %v142, %v141
    %v191 = vunpack.c.l.b16 %v59
    %v192 = vunpack.c.l.b16 %v60
    %v193 = vunpack.c.l.b16 %v61
    %v194 = vunpack.c.l.b16 %v62
    %v195 = vunpack.c.l.b16 %v63
    %v196 = vunpack.c.l.b16 %v64
    %v197 = vunpack.c.l.b16 %v65
    %v198 = vunpack.c.l.b16 %v66
    %v199 = vunpack.c.l.b16 %v67
    %v200 = vunpack.c.l.b16 %v68
    %v201 = vunpack.c.l.b16 %v69
    %v202 = vunpack.c.l.b16 %v70
    %v203 = vunpack.c.l.b16 %v71
    %v204 = vunpack.c.l.b16 %v72
    %v205 = vunpack.c.l.b16 %v73
    %v206 = vunpack.c.l.b16 %v74
    %v207 = vpack.c.b16 %v192, %v191
    %v208 = vpack.c.b16 %v194, %v193
    %v209 = vpack.c.b16 %v196, %v195
    %v210 = vpack.c.b16 %v198, %v197
    %v211 = vpack.c.b16 %v200, %v199
    %v212 = vpack.c.b16 %v202, %v201
    %v213 = vpack.c.b16 %v204, %v203
    %v214 = vpack.c.b16 %v206, %v205
    %223 = vmatpush.bf16.msra.mxu0 %v214
    %224 = vmatpush.bf16.msra.mxu0 %v213
    %225 = vmatpush.bf16.msra.mxu0 %v212
    %226 = vmatpush.bf16.msra.mxu0 %v211
    %227 = vmatpush.bf16.msra.mxu0 %v210
    %228 = vmatpush.bf16.msra.mxu0 %v209
    %229 = vmatpush.bf16.msra.mxu0 %v208
    %230 = vmatpush.bf16.msra.mxu0 %v207
    %231 = vmatmul.bf16.gmra.mxu0 %v143
    %v232 = vpop.f32.mrf.mxu0
    %v233 = vadd.f32 %v77, %v232
    %v234 = vpop.f32.mrf.mxu0
    %v235 = vadd.f32 %v77, %v234
    %236 = vmatmul.bf16.gmra.mxu0 %v144
    %v237 = vpop.f32.mrf.mxu0
    %v238 = vadd.f32 %v77, %v237
    %v239 = vpop.f32.mrf.mxu0
    %v240 = vadd.f32 %v77, %v239
    %241 = vmatmul.bf16.gmra.mxu0 %v145
    %v242 = vpop.f32.mrf.mxu0
    %v243 = vadd.f32 %v77, %v242
    %v244 = vpop.f32.mrf.mxu0
    %v245 = vadd.f32 %v77, %v244
    %246 = vmatmul.bf16.gmra.mxu0 %v146
    %v247 = vpop.f32.mrf.mxu0
    %v248 = vadd.f32 %v77, %v247
    %v249 = vpop.f32.mrf.mxu0
    %v250 = vadd.f32 %v77, %v249
    %251 = vmatmul.bf16.gmra.mxu0 %v147
    %v252 = vpop.f32.mrf.mxu0
    %v253 = vadd.f32 %v77, %v252
    %v254 = vpop.f32.mrf.mxu0
    %v255 = vadd.f32 %v77, %v254
    %256 = vmatmul.bf16.gmra.mxu0 %v148
    %v257 = vpop.f32.mrf.mxu0
    %v258 = vadd.f32 %v77, %v257
    %v259 = vpop.f32.mrf.mxu0
    %v260 = vadd.f32 %v77, %v259
    %261 = vmatmul.bf16.gmra.mxu0 %v149
    %v262 = vpop.f32.mrf.mxu0
    %v263 = vadd.f32 %v77, %v262
    %v264 = vpop.f32.mrf.mxu0
    %v265 = vadd.f32 %v77, %v264
    %266 = vmatmul.bf16.gmra.mxu0 %v150
    %v267 = vpop.f32.mrf.mxu0
    %v268 = vadd.f32 %v77, %v267
    %v269 = vpop.f32.mrf.mxu0
    %v270 = vadd.f32 %v77, %v269
    %271 = vmatmul.bf16.gmra.mxu0 %v151
    %v272 = vpop.f32.mrf.mxu0
    %v273 = vadd.f32 %v77, %v272
    %v274 = vpop.f32.mrf.mxu0
    %v275 = vadd.f32 %v77, %v274
    %276 = vmatmul.bf16.gmra.mxu0 %v152
    %v277 = vpop.f32.mrf.mxu0
    %v278 = vadd.f32 %v77, %v277
    %v279 = vpop.f32.mrf.mxu0
    %v280 = vadd.f32 %v77, %v279
    %281 = vmatmul.bf16.gmra.mxu0 %v153
    %v282 = vpop.f32.mrf.mxu0
    %v283 = vadd.f32 %v77, %v282
    %v284 = vpop.f32.mrf.mxu0
    %v285 = vadd.f32 %v77, %v284
    %286 = vmatmul.bf16.gmra.mxu0 %v154
    %v287 = vpop.f32.mrf.mxu0
    %v288 = vadd.f32 %v77, %v287
    %v289 = vpop.f32.mrf.mxu0
    %v290 = vadd.f32 %v77, %v289
    %291 = vmatmul.bf16.gmra.mxu0 %v155
    %v292 = vpop.f32.mrf.mxu0
    %v293 = vadd.f32 %v77, %v292
    %v294 = vpop.f32.mrf.mxu0
    %v295 = vadd.f32 %v77, %v294
    %296 = vmatmul.bf16.gmra.mxu0 %v156
    %v297 = vpop.f32.mrf.mxu0
    %v298 = vadd.f32 %v77, %v297
    %v299 = vpop.f32.mrf.mxu0
    %v300 = vadd.f32 %v77, %v299
    %301 = vmatmul.bf16.gmra.mxu0 %v157
    %v302 = vpop.f32.mrf.mxu0
    %v303 = vadd.f32 %v77, %v302
    %v304 = vpop.f32.mrf.mxu0
    %v305 = vadd.f32 %v77, %v304
    %306 = vmatmul.bf16.gmra.mxu0 %v158
    %v307 = vpop.f32.mrf.mxu0
    %v308 = vadd.f32 %v77, %v307
    %v309 = vpop.f32.mrf.mxu0
    %v310 = vadd.f32 %v77, %v309
    %311 = vdwg.mxu0
    %v312 = vsub.f32 %v233, %v273
    %v313 = vsub.f32 %v235, %v275
    %v314 = vsub.f32 %v238, %v278
    %v315 = vsub.f32 %v240, %v280
    %v316 = vsub.f32 %v243, %v283
    %v317 = vsub.f32 %v245, %v285
    %v318 = vsub.f32 %v248, %v288
    %v319 = vsub.f32 %v250, %v290
    %v320 = vsub.f32 %v253, %v293
    %v321 = vsub.f32 %v255, %v295
    %v322 = vsub.f32 %v258, %v298
    %v323 = vsub.f32 %v260, %v300
    %v324 = vsub.f32 %v263, %v303
    %v325 = vsub.f32 %v265, %v305
    %v326 = vsub.f32 %v268, %v308
    %v327 = vsub.f32 %v270, %v310
    %v328 = vmul.f32 %v312, %v312
    %v329 = vmul.f32 %v313, %v313
    %v330 = vmul.f32 %v314, %v314
    %v331 = vmul.f32 %v315, %v315
    %v332 = vmul.f32 %v316, %v316
    %v333 = vmul.f32 %v317, %v317
    %v334 = vmul.f32 %v318, %v318
    %v335 = vmul.f32 %v319, %v319
    %v336 = vmul.f32 %v320, %v320
    %v337 = vmul.f32 %v321, %v321
    %v338 = vmul.f32 %v322, %v322
    %v339 = vmul.f32 %v323, %v323
    %v340 = vmul.f32 %v324, %v324
    %v341 = vmul.f32 %v325, %v325
    %v342 = vmul.f32 %v326, %v326
    %v343 = vmul.f32 %v327, %v327
    %v344 = vadd.f32 %v328, %v329
    %v345 = vadd.f32 %v344, %v330
    %v346 = vadd.f32 %v345, %v331
    %v347 = vadd.f32 %v346, %v332
    %v348 = vadd.f32 %v347, %v333
    %v349 = vadd.f32 %v348, %v334
    %v350 = vadd.f32 %v349, %v335
    %v351 = vadd.f32 %v350, %v336
    %v352 = vadd.f32 %v351, %v337
    %v353 = vadd.f32 %v352, %v338
    %v354 = vadd.f32 %v353, %v339
    %v355 = vadd.f32 %v354, %v340
    %v356 = vadd.f32 %v355, %v341
    %v357 = vadd.f32 %v356, %v342
    %v358 = vadd.f32 %v357, %v343
    %359 = vadd.xlane.f32.xlu0 %v358
    %v360 = vpop.xlane.xlu0 %359
    %v361 = vrot.slane %v360, 4
    %v362 = vadd.f32 %v360, %v361
    %v363 = vrot.slane %v362, 2
    %v364 = vadd.f32 %v362, %v363
    %v365 = vrot.slane %v364, 1
    %v366 = vadd.f32 %v364, %v365
    %s367 = vtos %v366
    %v368 = vmul.f32 %v233, 0.9
    %v369 = vmul.f32 %v235, 0.9
    %v370 = vmul.f32 %v238, 0.9
    %v371 = vmul.f32 %v240, 0.9
    %v372 = vmul.f32 %v243, 0.9
    %v373 = vmul.f32 %v245, 0.9
    %v374 = vmul.f32 %v248, 0.9
    %v375 = vmul.f32 %v250, 0.9
    %v376 = vmul.f32 %v253, 0.9
    %v377 = vmul.f32 %v255, 0.9
    %v378 = vmul.f32 %v258, 0.9
    %v379 = vmul.f32 %v260, 0.9
    %v380 = vmul.f32 %v263, 0.9
    %v381 = vmul.f32 %v265, 0.9
    %v382 = vmul.f32 %v268, 0.9
    %v383 = vmul.f32 %v270, 0.9
    %v384 = vld [vmem:[%s3] sm:$0xff]
    %v385 = vld [vmem:[%s3 + $0x8] sm:$0xff]
    %v386 = vld [vmem:[%s3 + $0x10] sm:$0xff]
    %v387 = vld [vmem:[%s3 + $0x18] sm:$0xff]
    %v388 = vld [vmem:[%s3 + $0x20] sm:$0xff]
    %v389 = vld [vmem:[%s3 + $0x28] sm:$0xff]
    %v390 = vld [vmem:[%s3 + $0x30] sm:$0xff]
    %v391 = vld [vmem:[%s3 + $0x38] sm:$0xff]
    %v392 = vld [vmem:[%s3 + $0x40] sm:$0xff]
    %v393 = vld [vmem:[%s3 + $0x48] sm:$0xff]
    %v394 = vld [vmem:[%s3 + $0x50] sm:$0xff]
    %v395 = vld [vmem:[%s3 + $0x58] sm:$0xff]
    %v396 = vld [vmem:[%s3 + $0x60] sm:$0xff]
    %v397 = vld [vmem:[%s3 + $0x68] sm:$0xff]
    %v398 = vld [vmem:[%s3 + $0x70] sm:$0xff]
    %v399 = vld [vmem:[%s3 + $0x78] sm:$0xff]
    %v400 = vmul.f32 %v384, 0.4358899
    %v401 = vmul.f32 %v385, 0.4358899
    %v402 = vmul.f32 %v386, 0.4358899
    %v403 = vmul.f32 %v387, 0.4358899
    %v404 = vmul.f32 %v388, 0.4358899
    %v405 = vmul.f32 %v389, 0.4358899
    %v406 = vmul.f32 %v390, 0.4358899
    %v407 = vmul.f32 %v391, 0.4358899
    %v408 = vmul.f32 %v392, 0.4358899
    %v409 = vmul.f32 %v393, 0.4358899
    %v410 = vmul.f32 %v394, 0.4358899
    %v411 = vmul.f32 %v395, 0.4358899
    %v412 = vmul.f32 %v396, 0.4358899
    %v413 = vmul.f32 %v397, 0.4358899
    %v414 = vmul.f32 %v398, 0.4358899
    %v415 = vmul.f32 %v399, 0.4358899
    %v416 = vadd.f32 %v368, %v400
    %v417 = vadd.f32 %v369, %v401
    %v418 = vadd.f32 %v370, %v402
    %v419 = vadd.f32 %v371, %v403
    %v420 = vadd.f32 %v372, %v404
    %v421 = vadd.f32 %v373, %v405
    %v422 = vadd.f32 %v374, %v406
    %v423 = vadd.f32 %v375, %v407
    %v424 = vadd.f32 %v376, %v408
    %v425 = vadd.f32 %v377, %v409
    %v426 = vadd.f32 %v378, %v410
    %v427 = vadd.f32 %v379, %v411
    %v428 = vadd.f32 %v380, %v412
    %v429 = vadd.f32 %v381, %v413
    %v430 = vadd.f32 %v382, %v414
    %v431 = vadd.f32 %v383, %v415
    %v432 = vpack.c.bf16 %v417, %v416
    %v433 = vpack.c.bf16 %v419, %v418
    %v434 = vpack.c.bf16 %v421, %v420
    %v435 = vpack.c.bf16 %v423, %v422
    %v436 = vpack.c.bf16 %v425, %v424
    %v437 = vpack.c.bf16 %v427, %v426
    %v438 = vpack.c.bf16 %v429, %v428
    %v439 = vpack.c.bf16 %v431, %v430
    %v440 = vld [vmem:[%s4] sm:$0xf]
    %v441 = vld [vmem:[%s4 + $0x4] sm:$0xf]
    %v442 = vld [vmem:[%s4 + $0x8] sm:$0xf]
    %v443 = vld [vmem:[%s4 + $0xc] sm:$0xf]
    %v444 = vld [vmem:[%s4 + $0x10] sm:$0xf]
    %v445 = vld [vmem:[%s4 + $0x14] sm:$0xf]
    %v446 = vld [vmem:[%s4 + $0x18] sm:$0xf]
    %v447 = vld [vmem:[%s4 + $0x1c] sm:$0xf]
    %v448 = vld [vmem:[%s4 + $0x20] sm:$0xf]
    %v449 = vld [vmem:[%s4 + $0x24] sm:$0xf]
    %v450 = vld [vmem:[%s4 + $0x28] sm:$0xf]
    %v451 = vld [vmem:[%s4 + $0x2c] sm:$0xf]
    %v452 = vld [vmem:[%s4 + $0x30] sm:$0xf]
    %v453 = vld [vmem:[%s4 + $0x34] sm:$0xf]
    %v454 = vld [vmem:[%s4 + $0x38] sm:$0xf]
    %v455 = vld [vmem:[%s4 + $0x3c] sm:$0xf]
    %v472 = vunpack.c.l.b16 %v440
    %v473 = vunpack.c.l.b16 %v441
    %v474 = vunpack.c.l.b16 %v442
    %v475 = vunpack.c.l.b16 %v443
    %v476 = vunpack.c.l.b16 %v444
    %v477 = vunpack.c.l.b16 %v445
    %v478 = vunpack.c.l.b16 %v446
    %v479 = vunpack.c.l.b16 %v447
    %v480 = vunpack.c.l.b16 %v448
    %v481 = vunpack.c.l.b16 %v449
    %v482 = vunpack.c.l.b16 %v450
    %v483 = vunpack.c.l.b16 %v451
    %v484 = vunpack.c.l.b16 %v452
    %v485 = vunpack.c.l.b16 %v453
    %v486 = vunpack.c.l.b16 %v454
    %v487 = vunpack.c.l.b16 %v455
    %v488 = vpack.c.b16 %v473, %v472
    %v489 = vpack.c.b16 %v475, %v474
    %v490 = vpack.c.b16 %v477, %v476
    %v491 = vpack.c.b16 %v479, %v478
    %v492 = vpack.c.b16 %v481, %v480
    %v493 = vpack.c.b16 %v483, %v482
    %v494 = vpack.c.b16 %v485, %v484
    %v495 = vpack.c.b16 %v487, %v486
    %504 = vmatpush.bf16.msra.mxu0 %v439
    %505 = vmatpush.bf16.msra.mxu0 %v438
    %506 = vmatpush.bf16.msra.mxu0 %v437
    %507 = vmatpush.bf16.msra.mxu0 %v436
    %508 = vmatpush.bf16.msra.mxu0 %v435
    %509 = vmatpush.bf16.msra.mxu0 %v434
    %510 = vmatpush.bf16.msra.mxu0 %v433
    %511 = vmatpush.bf16.msra.mxu0 %v432
    %512 = vmatmul.bf16.gmra.mxu0 %v488
    %v513 = vpop.f32.mrf.mxu0
    %v514 = vadd.f32 0.0, %v513
    %v515 = vpop.f32.mrf.mxu0
    %v516 = vadd.f32 0.0, %v515
    %517 = vmatmul.bf16.gmra.mxu0 %v489
    %v518 = vpop.f32.mrf.mxu0
    %v519 = vadd.f32 0.0, %v518
    %v520 = vpop.f32.mrf.mxu0
    %v521 = vadd.f32 0.0, %v520
    %522 = vmatmul.bf16.gmra.mxu0 %v490
    %v523 = vpop.f32.mrf.mxu0
    %v524 = vadd.f32 0.0, %v523
    %v525 = vpop.f32.mrf.mxu0
    %v526 = vadd.f32 0.0, %v525
    %527 = vmatmul.bf16.gmra.mxu0 %v491
    %v528 = vpop.f32.mrf.mxu0
    %v529 = vadd.f32 0.0, %v528
    %v530 = vpop.f32.mrf.mxu0
    %v531 = vadd.f32 0.0, %v530
    %532 = vmatmul.bf16.gmra.mxu0 %v492
    %v533 = vpop.f32.mrf.mxu0
    %v534 = vadd.f32 0.0, %v533
    %v535 = vpop.f32.mrf.mxu0
    %v536 = vadd.f32 0.0, %v535
    %537 = vmatmul.bf16.gmra.mxu0 %v493
    %v538 = vpop.f32.mrf.mxu0
    %v539 = vadd.f32 0.0, %v538
    %v540 = vpop.f32.mrf.mxu0
    %v541 = vadd.f32 0.0, %v540
    %542 = vmatmul.bf16.gmra.mxu0 %v494
    %v543 = vpop.f32.mrf.mxu0
    %v544 = vadd.f32 0.0, %v543
    %v545 = vpop.f32.mrf.mxu0
    %v546 = vadd.f32 0.0, %v545
    %547 = vmatmul.bf16.gmra.mxu0 %v495
    %v548 = vpop.f32.mrf.mxu0
    %v549 = vadd.f32 0.0, %v548
    %v550 = vpop.f32.mrf.mxu0
    %v551 = vadd.f32 0.0, %v550
    %552 = vdwg.mxu0
    %v553 = vpack.c.bf16 %v516, %v514
    %v554 = vpack.c.bf16 %v521, %v519
    %v555 = vpack.c.bf16 %v526, %v524
    %v556 = vpack.c.bf16 %v531, %v529
    %v557 = vpack.c.bf16 %v536, %v534
    %v558 = vpack.c.bf16 %v541, %v539
    %v559 = vpack.c.bf16 %v546, %v544
    %v560 = vpack.c.bf16 %v551, %v549
    %v561 = vld [vmem:[%s5] sm:$0xf]
    %v562 = vld [vmem:[%s5 + $0x4] sm:$0xf]
    %v563 = vld [vmem:[%s5 + $0x8] sm:$0xf]
    %v564 = vld [vmem:[%s5 + $0xc] sm:$0xf]
    %v565 = vld [vmem:[%s5 + $0x10] sm:$0xf]
    %v566 = vld [vmem:[%s5 + $0x14] sm:$0xf]
    %v567 = vld [vmem:[%s5 + $0x18] sm:$0xf]
    %v568 = vld [vmem:[%s5 + $0x1c] sm:$0xf]
    %v569 = vld [vmem:[%s5 + $0x20] sm:$0xf]
    %v570 = vld [vmem:[%s5 + $0x24] sm:$0xf]
    %v571 = vld [vmem:[%s5 + $0x28] sm:$0xf]
    %v572 = vld [vmem:[%s5 + $0x2c] sm:$0xf]
    %v573 = vld [vmem:[%s5 + $0x30] sm:$0xf]
    %v574 = vld [vmem:[%s5 + $0x34] sm:$0xf]
    %v575 = vld [vmem:[%s5 + $0x38] sm:$0xf]
    %v576 = vld [vmem:[%s5 + $0x3c] sm:$0xf]
    %v577 = vld [vmem:[%s4 + $0x40] sm:$0xf]
    %v578 = vld [vmem:[%s4 + $0x44] sm:$0xf]
    %v579 = vld [vmem:[%s4 + $0x48] sm:$0xf]
    %v580 = vld [vmem:[%s4 + $0x4c] sm:$0xf]
    %v581 = vld [vmem:[%s4 + $0x50] sm:$0xf]
    %v582 = vld [vmem:[%s4 + $0x54] sm:$0xf]
    %v583 = vld [vmem:[%s4 + $0x58] sm:$0xf]
    %v584 = vld [vmem:[%s4 + $0x5c] sm:$0xf]
    %v585 = vld [vmem:[%s4 + $0x60] sm:$0xf]
    %v586 = vld [vmem:[%s4 + $0x64] sm:$0xf]
    %v587 = vld [vmem:[%s4 + $0x68] sm:$0xf]
    %v588 = vld [vmem:[%s4 + $0x6c] sm:$0xf]
    %v589 = vld [vmem:[%s4 + $0x70] sm:$0xf]
    %v590 = vld [vmem:[%s4 + $0x74] sm:$0xf]
    %v591 = vld [vmem:[%s4 + $0x78] sm:$0xf]
    %v592 = vld [vmem:[%s4 + $0x7c] sm:$0xf]
    %v609 = vunpack.c.l.b16 %v577
    %v610 = vunpack.c.l.b16 %v578
    %v611 = vunpack.c.l.b16 %v579
    %v612 = vunpack.c.l.b16 %v580
    %v613 = vunpack.c.l.b16 %v581
    %v614 = vunpack.c.l.b16 %v582
    %v615 = vunpack.c.l.b16 %v583
    %v616 = vunpack.c.l.b16 %v584
    %v617 = vunpack.c.l.b16 %v585
    %v618 = vunpack.c.l.b16 %v586
    %v619 = vunpack.c.l.b16 %v587
    %v620 = vunpack.c.l.b16 %v588
    %v621 = vunpack.c.l.b16 %v589
    %v622 = vunpack.c.l.b16 %v590
    %v623 = vunpack.c.l.b16 %v591
    %v624 = vunpack.c.l.b16 %v592
    %v625 = vpack.c.b16 %v610, %v609
    %v626 = vpack.c.b16 %v612, %v611
    %v627 = vpack.c.b16 %v614, %v613
    %v628 = vpack.c.b16 %v616, %v615
    %v629 = vpack.c.b16 %v618, %v617
    %v630 = vpack.c.b16 %v620, %v619
    %v631 = vpack.c.b16 %v622, %v621
    %v632 = vpack.c.b16 %v624, %v623
    %641 = vmatpush.bf16.msra.mxu0 %v439
    %642 = vmatpush.bf16.msra.mxu0 %v438
    %643 = vmatpush.bf16.msra.mxu0 %v437
    %644 = vmatpush.bf16.msra.mxu0 %v436
    %645 = vmatpush.bf16.msra.mxu0 %v435
    %646 = vmatpush.bf16.msra.mxu0 %v434
    %647 = vmatpush.bf16.msra.mxu0 %v433
    %648 = vmatpush.bf16.msra.mxu0 %v432
    %649 = vmatmul.bf16.gmra.mxu0 %v625
    %v650 = vpop.f32.mrf.mxu0
    %v651 = vadd.f32 0.0, %v650
    %v652 = vpop.f32.mrf.mxu0
    %v653 = vadd.f32 0.0, %v652
    %654 = vmatmul.bf16.gmra.mxu0 %v626
    %v655 = vpop.f32.mrf.mxu0
    %v656 = vadd.f32 0.0, %v655
    %v657 = vpop.f32.mrf.mxu0
    %v658 = vadd.f32 0.0, %v657
    %659 = vmatmul.bf16.gmra.mxu0 %v627
    %v660 = vpop.f32.mrf.mxu0
    %v661 = vadd.f32 0.0, %v660
    %v662 = vpop.f32.mrf.mxu0
    %v663 = vadd.f32 0.0, %v662
    %664 = vmatmul.bf16.gmra.mxu0 %v628
    %v665 = vpop.f32.mrf.mxu0
    %v666 = vadd.f32 0.0, %v665
    %v667 = vpop.f32.mrf.mxu0
    %v668 = vadd.f32 0.0, %v667
    %669 = vmatmul.bf16.gmra.mxu0 %v629
    %v670 = vpop.f32.mrf.mxu0
    %v671 = vadd.f32 0.0, %v670
    %v672 = vpop.f32.mrf.mxu0
    %v673 = vadd.f32 0.0, %v672
    %674 = vmatmul.bf16.gmra.mxu0 %v630
    %v675 = vpop.f32.mrf.mxu0
    %v676 = vadd.f32 0.0, %v675
    %v677 = vpop.f32.mrf.mxu0
    %v678 = vadd.f32 0.0, %v677
    %679 = vmatmul.bf16.gmra.mxu0 %v631
    %v680 = vpop.f32.mrf.mxu0
    %v681 = vadd.f32 0.0, %v680
    %v682 = vpop.f32.mrf.mxu0
    %v683 = vadd.f32 0.0, %v682
    %684 = vmatmul.bf16.gmra.mxu0 %v632
    %v685 = vpop.f32.mrf.mxu0
    %v686 = vadd.f32 0.0, %v685
    %v687 = vpop.f32.mrf.mxu0
    %v688 = vadd.f32 0.0, %v687
    %689 = vdwg.mxu0
    %v690 = vpack.c.bf16 %v653, %v651
    %v691 = vpack.c.bf16 %v658, %v656
    %v692 = vpack.c.bf16 %v663, %v661
    %v693 = vpack.c.bf16 %v668, %v666
    %v694 = vpack.c.bf16 %v673, %v671
    %v695 = vpack.c.bf16 %v678, %v676
    %v696 = vpack.c.bf16 %v683, %v681
    %v697 = vpack.c.bf16 %v688, %v686
    %v698 = vld [vmem:[%s5 + $0x40] sm:$0xf]
    %v699 = vld [vmem:[%s5 + $0x44] sm:$0xf]
    %v700 = vld [vmem:[%s5 + $0x48] sm:$0xf]
    %v701 = vld [vmem:[%s5 + $0x4c] sm:$0xf]
    %v702 = vld [vmem:[%s5 + $0x50] sm:$0xf]
    %v703 = vld [vmem:[%s5 + $0x54] sm:$0xf]
    %v704 = vld [vmem:[%s5 + $0x58] sm:$0xf]
    %v705 = vld [vmem:[%s5 + $0x5c] sm:$0xf]
    %v706 = vld [vmem:[%s5 + $0x60] sm:$0xf]
    %v707 = vld [vmem:[%s5 + $0x64] sm:$0xf]
    %v708 = vld [vmem:[%s5 + $0x68] sm:$0xf]
    %v709 = vld [vmem:[%s5 + $0x6c] sm:$0xf]
    %v710 = vld [vmem:[%s5 + $0x70] sm:$0xf]
    %v711 = vld [vmem:[%s5 + $0x74] sm:$0xf]
    %v712 = vld [vmem:[%s5 + $0x78] sm:$0xf]
    %v713 = vld [vmem:[%s5 + $0x7c] sm:$0xf]
    %v730 = vunpack.c.l.b16 %v698
    %v731 = vunpack.c.l.b16 %v699
    %v732 = vunpack.c.l.b16 %v700
    %v733 = vunpack.c.l.b16 %v701
    %v734 = vunpack.c.l.b16 %v702
    %v735 = vunpack.c.l.b16 %v703
    %v736 = vunpack.c.l.b16 %v704
    %v737 = vunpack.c.l.b16 %v705
    %v738 = vunpack.c.l.b16 %v706
    %v739 = vunpack.c.l.b16 %v707
    %v740 = vunpack.c.l.b16 %v708
    %v741 = vunpack.c.l.b16 %v709
    %v742 = vunpack.c.l.b16 %v710
    %v743 = vunpack.c.l.b16 %v711
    %v744 = vunpack.c.l.b16 %v712
    %v745 = vunpack.c.l.b16 %v713
    %v746 = vpack.c.b16 %v731, %v730
    %v747 = vpack.c.b16 %v733, %v732
    %v748 = vpack.c.b16 %v735, %v734
    %v749 = vpack.c.b16 %v737, %v736
    %v750 = vpack.c.b16 %v739, %v738
    %v751 = vpack.c.b16 %v741, %v740
    %v752 = vpack.c.b16 %v743, %v742
    %v753 = vpack.c.b16 %v745, %v744
    %762 = vmatpush.bf16.msra.mxu0 %v753
    %763 = vmatpush.bf16.msra.mxu0 %v752
    %764 = vmatpush.bf16.msra.mxu0 %v751
    %765 = vmatpush.bf16.msra.mxu0 %v750
    %766 = vmatpush.bf16.msra.mxu0 %v749
    %767 = vmatpush.bf16.msra.mxu0 %v748
    %768 = vmatpush.bf16.msra.mxu0 %v747
    %769 = vmatpush.bf16.msra.mxu0 %v746
    %770 = vmatmul.bf16.gmra.mxu0 %v690
    %v771 = vpop.f32.mrf.mxu0
    %v772 = vadd.f32 0.0, %v771
    %v773 = vpop.f32.mrf.mxu0
    %v774 = vadd.f32 0.0, %v773
    %775 = vmatmul.bf16.gmra.mxu0 %v691
    %v776 = vpop.f32.mrf.mxu0
    %v777 = vadd.f32 0.0, %v776
    %v778 = vpop.f32.mrf.mxu0
    %v779 = vadd.f32 0.0, %v778
    %780 = vmatmul.bf16.gmra.mxu0 %v692
    %v781 = vpop.f32.mrf.mxu0
    %v782 = vadd.f32 0.0, %v781
    %v783 = vpop.f32.mrf.mxu0
    %v784 = vadd.f32 0.0, %v783
    %785 = vmatmul.bf16.gmra.mxu0 %v693
    %v786 = vpop.f32.mrf.mxu0
    %v787 = vadd.f32 0.0, %v786
    %v788 = vpop.f32.mrf.mxu0
    %v789 = vadd.f32 0.0, %v788
    %790 = vmatmul.bf16.gmra.mxu0 %v694
    %v791 = vpop.f32.mrf.mxu0
    %v792 = vadd.f32 0.0, %v791
    %v793 = vpop.f32.mrf.mxu0
    %v794 = vadd.f32 0.0, %v793
    %795 = vmatmul.bf16.gmra.mxu0 %v695
    %v796 = vpop.f32.mrf.mxu0
    %v797 = vadd.f32 0.0, %v796
    %v798 = vpop.f32.mrf.mxu0
    %v799 = vadd.f32 0.0, %v798
    %800 = vmatmul.bf16.gmra.mxu0 %v696
    %v801 = vpop.f32.mrf.mxu0
    %v802 = vadd.f32 0.0, %v801
    %v803 = vpop.f32.mrf.mxu0
    %v804 = vadd.f32 0.0, %v803
    %805 = vmatmul.bf16.gmra.mxu0 %v697
    %v806 = vpop.f32.mrf.mxu0
    %v807 = vadd.f32 0.0, %v806
    %v808 = vpop.f32.mrf.mxu0
    %v809 = vadd.f32 0.0, %v808
    %810 = vdwg.mxu0
    %v827 = vunpack.c.l.b16 %v561
    %v828 = vunpack.c.l.b16 %v562
    %v829 = vunpack.c.l.b16 %v563
    %v830 = vunpack.c.l.b16 %v564
    %v831 = vunpack.c.l.b16 %v565
    %v832 = vunpack.c.l.b16 %v566
    %v833 = vunpack.c.l.b16 %v567
    %v834 = vunpack.c.l.b16 %v568
    %v835 = vunpack.c.l.b16 %v569
    %v836 = vunpack.c.l.b16 %v570
    %v837 = vunpack.c.l.b16 %v571
    %v838 = vunpack.c.l.b16 %v572
    %v839 = vunpack.c.l.b16 %v573
    %v840 = vunpack.c.l.b16 %v574
    %v841 = vunpack.c.l.b16 %v575
    %v842 = vunpack.c.l.b16 %v576
    %v843 = vpack.c.b16 %v828, %v827
    %v844 = vpack.c.b16 %v830, %v829
    %v845 = vpack.c.b16 %v832, %v831
    %v846 = vpack.c.b16 %v834, %v833
    %v847 = vpack.c.b16 %v836, %v835
    %v848 = vpack.c.b16 %v838, %v837
    %v849 = vpack.c.b16 %v840, %v839
    %v850 = vpack.c.b16 %v842, %v841
    %859 = vmatpush.bf16.msra.mxu0 %v850
    %860 = vmatpush.bf16.msra.mxu0 %v849
    %861 = vmatpush.bf16.msra.mxu0 %v848
    %862 = vmatpush.bf16.msra.mxu0 %v847
    %863 = vmatpush.bf16.msra.mxu0 %v846
    %864 = vmatpush.bf16.msra.mxu0 %v845
    %865 = vmatpush.bf16.msra.mxu0 %v844
    %866 = vmatpush.bf16.msra.mxu0 %v843
    %867 = vmatmul.bf16.gmra.mxu0 %v553
    %v868 = vpop.f32.mrf.mxu0
    %v869 = vadd.f32 %v772, %v868
    %v870 = vpop.f32.mrf.mxu0
    %v871 = vadd.f32 %v774, %v870
    %872 = vmatmul.bf16.gmra.mxu0 %v554
    %v873 = vpop.f32.mrf.mxu0
    %v874 = vadd.f32 %v777, %v873
    %v875 = vpop.f32.mrf.mxu0
    %v876 = vadd.f32 %v779, %v875
    %877 = vmatmul.bf16.gmra.mxu0 %v555
    %v878 = vpop.f32.mrf.mxu0
    %v879 = vadd.f32 %v782, %v878
    %v880 = vpop.f32.mrf.mxu0
    %v881 = vadd.f32 %v784, %v880
    %882 = vmatmul.bf16.gmra.mxu0 %v556
    %v883 = vpop.f32.mrf.mxu0
    %v884 = vadd.f32 %v787, %v883
    %v885 = vpop.f32.mrf.mxu0
    %v886 = vadd.f32 %v789, %v885
    %887 = vmatmul.bf16.gmra.mxu0 %v557
    %v888 = vpop.f32.mrf.mxu0
    %v889 = vadd.f32 %v792, %v888
    %v890 = vpop.f32.mrf.mxu0
    %v891 = vadd.f32 %v794, %v890
    %892 = vmatmul.bf16.gmra.mxu0 %v558
    %v893 = vpop.f32.mrf.mxu0
    %v894 = vadd.f32 %v797, %v893
    %v895 = vpop.f32.mrf.mxu0
    %v896 = vadd.f32 %v799, %v895
    %897 = vmatmul.bf16.gmra.mxu0 %v559
    %v898 = vpop.f32.mrf.mxu0
    %v899 = vadd.f32 %v802, %v898
    %v900 = vpop.f32.mrf.mxu0
    %v901 = vadd.f32 %v804, %v900
    %902 = vmatmul.bf16.gmra.mxu0 %v560
    %v903 = vpop.f32.mrf.mxu0
    %v904 = vadd.f32 %v807, %v903
    %v905 = vpop.f32.mrf.mxu0
    %v906 = vadd.f32 %v809, %v905
    %907 = vdwg.mxu0
    %v908 = vld [vmem:[%s4 + $0x80] sm:$0xf]
    %v909 = vld [vmem:[%s4 + $0x84] sm:$0xf]
    %v910 = vld [vmem:[%s4 + $0x88] sm:$0xf]
    %v911 = vld [vmem:[%s4 + $0x8c] sm:$0xf]
    %v912 = vld [vmem:[%s4 + $0x90] sm:$0xf]
    %v913 = vld [vmem:[%s4 + $0x94] sm:$0xf]
    %v914 = vld [vmem:[%s4 + $0x98] sm:$0xf]
    %v915 = vld [vmem:[%s4 + $0x9c] sm:$0xf]
    %v916 = vld [vmem:[%s4 + $0xa0] sm:$0xf]
    %v917 = vld [vmem:[%s4 + $0xa4] sm:$0xf]
    %v918 = vld [vmem:[%s4 + $0xa8] sm:$0xf]
    %v919 = vld [vmem:[%s4 + $0xac] sm:$0xf]
    %v920 = vld [vmem:[%s4 + $0xb0] sm:$0xf]
    %v921 = vld [vmem:[%s4 + $0xb4] sm:$0xf]
    %v922 = vld [vmem:[%s4 + $0xb8] sm:$0xf]
    %v923 = vld [vmem:[%s4 + $0xbc] sm:$0xf]
    %v940 = vunpack.c.l.b16 %v908
    %v941 = vunpack.c.l.b16 %v909
    %v942 = vunpack.c.l.b16 %v910
    %v943 = vunpack.c.l.b16 %v911
    %v944 = vunpack.c.l.b16 %v912
    %v945 = vunpack.c.l.b16 %v913
    %v946 = vunpack.c.l.b16 %v914
    %v947 = vunpack.c.l.b16 %v915
    %v948 = vunpack.c.l.b16 %v916
    %v949 = vunpack.c.l.b16 %v917
    %v950 = vunpack.c.l.b16 %v918
    %v951 = vunpack.c.l.b16 %v919
    %v952 = vunpack.c.l.b16 %v920
    %v953 = vunpack.c.l.b16 %v921
    %v954 = vunpack.c.l.b16 %v922
    %v955 = vunpack.c.l.b16 %v923
    %v956 = vpack.c.b16 %v941, %v940
    %v957 = vpack.c.b16 %v943, %v942
    %v958 = vpack.c.b16 %v945, %v944
    %v959 = vpack.c.b16 %v947, %v946
    %v960 = vpack.c.b16 %v949, %v948
    %v961 = vpack.c.b16 %v951, %v950
    %v962 = vpack.c.b16 %v953, %v952
    %v963 = vpack.c.b16 %v955, %v954
    %972 = vmatpush.bf16.msra.mxu0 %v439
    %973 = vmatpush.bf16.msra.mxu0 %v438
    %974 = vmatpush.bf16.msra.mxu0 %v437
    %975 = vmatpush.bf16.msra.mxu0 %v436
    %976 = vmatpush.bf16.msra.mxu0 %v435
    %977 = vmatpush.bf16.msra.mxu0 %v434
    %978 = vmatpush.bf16.msra.mxu0 %v433
    %979 = vmatpush.bf16.msra.mxu0 %v432
    %980 = vmatmul.bf16.gmra.mxu0 %v956
    %v981 = vpop.f32.mrf.mxu0
    %v982 = vadd.f32 0.0, %v981
    %v983 = vpop.f32.mrf.mxu0
    %v984 = vadd.f32 0.0, %v983
    %985 = vmatmul.bf16.gmra.mxu0 %v957
    %v986 = vpop.f32.mrf.mxu0
    %v987 = vadd.f32 0.0, %v986
    %v988 = vpop.f32.mrf.mxu0
    %v989 = vadd.f32 0.0, %v988
    %990 = vmatmul.bf16.gmra.mxu0 %v958
    %v991 = vpop.f32.mrf.mxu0
    %v992 = vadd.f32 0.0, %v991
    %v993 = vpop.f32.mrf.mxu0
    %v994 = vadd.f32 0.0, %v993
    %995 = vmatmul.bf16.gmra.mxu0 %v959
    %v996 = vpop.f32.mrf.mxu0
    %v997 = vadd.f32 0.0, %v996
    %v998 = vpop.f32.mrf.mxu0
    %v999 = vadd.f32 0.0, %v998
    %1000 = vmatmul.bf16.gmra.mxu0 %v960
    %v1001 = vpop.f32.mrf.mxu0
    %v1002 = vadd.f32 0.0, %v1001
    %v1003 = vpop.f32.mrf.mxu0
    %v1004 = vadd.f32 0.0, %v1003
    %1005 = vmatmul.bf16.gmra.mxu0 %v961
    %v1006 = vpop.f32.mrf.mxu0
    %v1007 = vadd.f32 0.0, %v1006
    %v1008 = vpop.f32.mrf.mxu0
    %v1009 = vadd.f32 0.0, %v1008
    %1010 = vmatmul.bf16.gmra.mxu0 %v962
    %v1011 = vpop.f32.mrf.mxu0
    %v1012 = vadd.f32 0.0, %v1011
    %v1013 = vpop.f32.mrf.mxu0
    %v1014 = vadd.f32 0.0, %v1013
    %1015 = vmatmul.bf16.gmra.mxu0 %v963
    %v1016 = vpop.f32.mrf.mxu0
    %v1017 = vadd.f32 0.0, %v1016
    %v1018 = vpop.f32.mrf.mxu0
    %v1019 = vadd.f32 0.0, %v1018
    %1020 = vdwg.mxu0
    %v1021 = vpack.c.bf16 %v984, %v982
    %v1022 = vpack.c.bf16 %v989, %v987
    %v1023 = vpack.c.bf16 %v994, %v992
    %v1024 = vpack.c.bf16 %v999, %v997
    %v1025 = vpack.c.bf16 %v1004, %v1002
    %v1026 = vpack.c.bf16 %v1009, %v1007
    %v1027 = vpack.c.bf16 %v1014, %v1012
    %v1028 = vpack.c.bf16 %v1019, %v1017
    %v1029 = vld [vmem:[%s5 + $0x80] sm:$0xf]
    %v1030 = vld [vmem:[%s5 + $0x84] sm:$0xf]
    %v1031 = vld [vmem:[%s5 + $0x88] sm:$0xf]
    %v1032 = vld [vmem:[%s5 + $0x8c] sm:$0xf]
    %v1033 = vld [vmem:[%s5 + $0x90] sm:$0xf]
    %v1034 = vld [vmem:[%s5 + $0x94] sm:$0xf]
    %v1035 = vld [vmem:[%s5 + $0x98] sm:$0xf]
    %v1036 = vld [vmem:[%s5 + $0x9c] sm:$0xf]
    %v1037 = vld [vmem:[%s5 + $0xa0] sm:$0xf]
    %v1038 = vld [vmem:[%s5 + $0xa4] sm:$0xf]
    %v1039 = vld [vmem:[%s5 + $0xa8] sm:$0xf]
    %v1040 = vld [vmem:[%s5 + $0xac] sm:$0xf]
    %v1041 = vld [vmem:[%s5 + $0xb0] sm:$0xf]
    %v1042 = vld [vmem:[%s5 + $0xb4] sm:$0xf]
    %v1043 = vld [vmem:[%s5 + $0xb8] sm:$0xf]
    %v1044 = vld [vmem:[%s5 + $0xbc] sm:$0xf]
    %v1061 = vunpack.c.l.b16 %v1029
    %v1062 = vunpack.c.l.b16 %v1030
    %v1063 = vunpack.c.l.b16 %v1031
    %v1064 = vunpack.c.l.b16 %v1032
    %v1065 = vunpack.c.l.b16 %v1033
    %v1066 = vunpack.c.l.b16 %v1034
    %v1067 = vunpack.c.l.b16 %v1035
    %v1068 = vunpack.c.l.b16 %v1036
    %v1069 = vunpack.c.l.b16 %v1037
    %v1070 = vunpack.c.l.b16 %v1038
    %v1071 = vunpack.c.l.b16 %v1039
    %v1072 = vunpack.c.l.b16 %v1040
    %v1073 = vunpack.c.l.b16 %v1041
    %v1074 = vunpack.c.l.b16 %v1042
    %v1075 = vunpack.c.l.b16 %v1043
    %v1076 = vunpack.c.l.b16 %v1044
    %v1077 = vpack.c.b16 %v1062, %v1061
    %v1078 = vpack.c.b16 %v1064, %v1063
    %v1079 = vpack.c.b16 %v1066, %v1065
    %v1080 = vpack.c.b16 %v1068, %v1067
    %v1081 = vpack.c.b16 %v1070, %v1069
    %v1082 = vpack.c.b16 %v1072, %v1071
    %v1083 = vpack.c.b16 %v1074, %v1073
    %v1084 = vpack.c.b16 %v1076, %v1075
    %1093 = vmatpush.bf16.msra.mxu0 %v1084
    %1094 = vmatpush.bf16.msra.mxu0 %v1083
    %1095 = vmatpush.bf16.msra.mxu0 %v1082
    %1096 = vmatpush.bf16.msra.mxu0 %v1081
    %1097 = vmatpush.bf16.msra.mxu0 %v1080
    %1098 = vmatpush.bf16.msra.mxu0 %v1079
    %1099 = vmatpush.bf16.msra.mxu0 %v1078
    %1100 = vmatpush.bf16.msra.mxu0 %v1077
    %1101 = vmatmul.bf16.gmra.mxu0 %v1021
    %v1102 = vpop.f32.mrf.mxu0
    %v1103 = vadd.f32 0.0, %v1102
    %v1104 = vpop.f32.mrf.mxu0
    %v1105 = vadd.f32 0.0, %v1104
    %1106 = vmatmul.bf16.gmra.mxu0 %v1022
    %v1107 = vpop.f32.mrf.mxu0
    %v1108 = vadd.f32 0.0, %v1107
    %v1109 = vpop.f32.mrf.mxu0
    %v1110 = vadd.f32 0.0, %v1109
    %1111 = vmatmul.bf16.gmra.mxu0 %v1023
    %v1112 = vpop.f32.mrf.mxu0
    %v1113 = vadd.f32 0.0, %v1112
    %v1114 = vpop.f32.mrf.mxu0
    %v1115 = vadd.f32 0.0, %v1114
    %1116 = vmatmul.bf16.gmra.mxu0 %v1024
    %v1117 = vpop.f32.mrf.mxu0
    %v1118 = vadd.f32 0.0, %v1117
    %v1119 = vpop.f32.mrf.mxu0
    %v1120 = vadd.f32 0.0, %v1119
    %1121 = vmatmul.bf16.gmra.mxu0 %v1025
    %v1122 = vpop.f32.mrf.mxu0
    %v1123 = vadd.f32 0.0, %v1122
    %v1124 = vpop.f32.mrf.mxu0
    %v1125 = vadd.f32 0.0, %v1124
    %1126 = vmatmul.bf16.gmra.mxu0 %v1026
    %v1127 = vpop.f32.mrf.mxu0
    %v1128 = vadd.f32 0.0, %v1127
    %v1129 = vpop.f32.mrf.mxu0
    %v1130 = vadd.f32 0.0, %v1129
    %1131 = vmatmul.bf16.gmra.mxu0 %v1027
    %v1132 = vpop.f32.mrf.mxu0
    %v1133 = vadd.f32 0.0, %v1132
    %v1134 = vpop.f32.mrf.mxu0
    %v1135 = vadd.f32 0.0, %v1134
    %1136 = vmatmul.bf16.gmra.mxu0 %v1028
    %v1137 = vpop.f32.mrf.mxu0
    %v1138 = vadd.f32 0.0, %v1137
    %v1139 = vpop.f32.mrf.mxu0
    %v1140 = vadd.f32 0.0, %v1139
    %1141 = vdwg.mxu0
    %v1142 = vadd.f32 %v869, %v1103
    %v1143 = vadd.f32 %v871, %v1105
    %v1144 = vadd.f32 %v874, %v1108
    %v1145 = vadd.f32 %v876, %v1110
    %v1146 = vadd.f32 %v879, %v1113
    %v1147 = vadd.f32 %v881, %v1115
    %v1148 = vadd.f32 %v884, %v1118
    %v1149 = vadd.f32 %v886, %v1120
    %v1150 = vadd.f32 %v889, %v1123
    %v1151 = vadd.f32 %v891, %v1125
    %v1152 = vadd.f32 %v894, %v1128
    %v1153 = vadd.f32 %v896, %v1130
    %v1154 = vadd.f32 %v899, %v1133
    %v1155 = vadd.f32 %v901, %v1135
    %v1156 = vadd.f32 %v904, %v1138
    %v1157 = vadd.f32 %v906, %v1140
    %v1158 = vld [vmem:[%s4 + $0xc0] sm:$0xf]
    %v1159 = vld [vmem:[%s4 + $0xc4] sm:$0xf]
    %v1160 = vld [vmem:[%s4 + $0xc8] sm:$0xf]
    %v1161 = vld [vmem:[%s4 + $0xcc] sm:$0xf]
    %v1162 = vld [vmem:[%s4 + $0xd0] sm:$0xf]
    %v1163 = vld [vmem:[%s4 + $0xd4] sm:$0xf]
    %v1164 = vld [vmem:[%s4 + $0xd8] sm:$0xf]
    %v1165 = vld [vmem:[%s4 + $0xdc] sm:$0xf]
    %v1166 = vld [vmem:[%s4 + $0xe0] sm:$0xf]
    %v1167 = vld [vmem:[%s4 + $0xe4] sm:$0xf]
    %v1168 = vld [vmem:[%s4 + $0xe8] sm:$0xf]
    %v1169 = vld [vmem:[%s4 + $0xec] sm:$0xf]
    %v1170 = vld [vmem:[%s4 + $0xf0] sm:$0xf]
    %v1171 = vld [vmem:[%s4 + $0xf4] sm:$0xf]
    %v1172 = vld [vmem:[%s4 + $0xf8] sm:$0xf]
    %v1173 = vld [vmem:[%s4 + $0xfc] sm:$0xf]
    %v1190 = vunpack.c.l.b16 %v1158
    %v1191 = vunpack.c.l.b16 %v1159
    %v1192 = vunpack.c.l.b16 %v1160
    %v1193 = vunpack.c.l.b16 %v1161
    %v1194 = vunpack.c.l.b16 %v1162
    %v1195 = vunpack.c.l.b16 %v1163
    %v1196 = vunpack.c.l.b16 %v1164
    %v1197 = vunpack.c.l.b16 %v1165
    %v1198 = vunpack.c.l.b16 %v1166
    %v1199 = vunpack.c.l.b16 %v1167
    %v1200 = vunpack.c.l.b16 %v1168
    %v1201 = vunpack.c.l.b16 %v1169
    %v1202 = vunpack.c.l.b16 %v1170
    %v1203 = vunpack.c.l.b16 %v1171
    %v1204 = vunpack.c.l.b16 %v1172
    %v1205 = vunpack.c.l.b16 %v1173
    %v1206 = vpack.c.b16 %v1191, %v1190
    %v1207 = vpack.c.b16 %v1193, %v1192
    %v1208 = vpack.c.b16 %v1195, %v1194
    %v1209 = vpack.c.b16 %v1197, %v1196
    %v1210 = vpack.c.b16 %v1199, %v1198
    %v1211 = vpack.c.b16 %v1201, %v1200
    %v1212 = vpack.c.b16 %v1203, %v1202
    %v1213 = vpack.c.b16 %v1205, %v1204
    %1222 = vmatpush.bf16.msra.mxu0 %v439
    %1223 = vmatpush.bf16.msra.mxu0 %v438
    %1224 = vmatpush.bf16.msra.mxu0 %v437
    %1225 = vmatpush.bf16.msra.mxu0 %v436
    %1226 = vmatpush.bf16.msra.mxu0 %v435
    %1227 = vmatpush.bf16.msra.mxu0 %v434
    %1228 = vmatpush.bf16.msra.mxu0 %v433
    %1229 = vmatpush.bf16.msra.mxu0 %v432
    %1230 = vmatmul.bf16.gmra.mxu0 %v1206
    %v1231 = vpop.f32.mrf.mxu0
    %v1232 = vadd.f32 0.0, %v1231
    %v1233 = vpop.f32.mrf.mxu0
    %v1234 = vadd.f32 0.0, %v1233
    %1235 = vmatmul.bf16.gmra.mxu0 %v1207
    %v1236 = vpop.f32.mrf.mxu0
    %v1237 = vadd.f32 0.0, %v1236
    %v1238 = vpop.f32.mrf.mxu0
    %v1239 = vadd.f32 0.0, %v1238
    %1240 = vmatmul.bf16.gmra.mxu0 %v1208
    %v1241 = vpop.f32.mrf.mxu0
    %v1242 = vadd.f32 0.0, %v1241
    %v1243 = vpop.f32.mrf.mxu0
    %v1244 = vadd.f32 0.0, %v1243
    %1245 = vmatmul.bf16.gmra.mxu0 %v1209
    %v1246 = vpop.f32.mrf.mxu0
    %v1247 = vadd.f32 0.0, %v1246
    %v1248 = vpop.f32.mrf.mxu0
    %v1249 = vadd.f32 0.0, %v1248
    %1250 = vmatmul.bf16.gmra.mxu0 %v1210
    %v1251 = vpop.f32.mrf.mxu0
    %v1252 = vadd.f32 0.0, %v1251
    %v1253 = vpop.f32.mrf.mxu0
    %v1254 = vadd.f32 0.0, %v1253
    %1255 = vmatmul.bf16.gmra.mxu0 %v1211
    %v1256 = vpop.f32.mrf.mxu0
    %v1257 = vadd.f32 0.0, %v1256
    %v1258 = vpop.f32.mrf.mxu0
    %v1259 = vadd.f32 0.0, %v1258
    %1260 = vmatmul.bf16.gmra.mxu0 %v1212
    %v1261 = vpop.f32.mrf.mxu0
    %v1262 = vadd.f32 0.0, %v1261
    %v1263 = vpop.f32.mrf.mxu0
    %v1264 = vadd.f32 0.0, %v1263
    %1265 = vmatmul.bf16.gmra.mxu0 %v1213
    %v1266 = vpop.f32.mrf.mxu0
    %v1267 = vadd.f32 0.0, %v1266
    %v1268 = vpop.f32.mrf.mxu0
    %v1269 = vadd.f32 0.0, %v1268
    %1270 = vdwg.mxu0
    %v1271 = vpack.c.bf16 %v1234, %v1232
    %v1272 = vpack.c.bf16 %v1239, %v1237
    %v1273 = vpack.c.bf16 %v1244, %v1242
    %v1274 = vpack.c.bf16 %v1249, %v1247
    %v1275 = vpack.c.bf16 %v1254, %v1252
    %v1276 = vpack.c.bf16 %v1259, %v1257
    %v1277 = vpack.c.bf16 %v1264, %v1262
    %v1278 = vpack.c.bf16 %v1269, %v1267
    %v1279 = vld [vmem:[%s5 + $0xc0] sm:$0xf]
    %v1280 = vld [vmem:[%s5 + $0xc4] sm:$0xf]
    %v1281 = vld [vmem:[%s5 + $0xc8] sm:$0xf]
    %v1282 = vld [vmem:[%s5 + $0xcc] sm:$0xf]
    %v1283 = vld [vmem:[%s5 + $0xd0] sm:$0xf]
    %v1284 = vld [vmem:[%s5 + $0xd4] sm:$0xf]
    %v1285 = vld [vmem:[%s5 + $0xd8] sm:$0xf]
    %v1286 = vld [vmem:[%s5 + $0xdc] sm:$0xf]
    %v1287 = vld [vmem:[%s5 + $0xe0] sm:$0xf]
    %v1288 = vld [vmem:[%s5 + $0xe4] sm:$0xf]
    %v1289 = vld [vmem:[%s5 + $0xe8] sm:$0xf]
    %v1290 = vld [vmem:[%s5 + $0xec] sm:$0xf]
    %v1291 = vld [vmem:[%s5 + $0xf0] sm:$0xf]
    %v1292 = vld [vmem:[%s5 + $0xf4] sm:$0xf]
    %v1293 = vld [vmem:[%s5 + $0xf8] sm:$0xf]
    %v1294 = vld [vmem:[%s5 + $0xfc] sm:$0xf]
    %v1311 = vunpack.c.l.b16 %v1279
    %v1312 = vunpack.c.l.b16 %v1280
    %v1313 = vunpack.c.l.b16 %v1281
    %v1314 = vunpack.c.l.b16 %v1282
    %v1315 = vunpack.c.l.b16 %v1283
    %v1316 = vunpack.c.l.b16 %v1284
    %v1317 = vunpack.c.l.b16 %v1285
    %v1318 = vunpack.c.l.b16 %v1286
    %v1319 = vunpack.c.l.b16 %v1287
    %v1320 = vunpack.c.l.b16 %v1288
    %v1321 = vunpack.c.l.b16 %v1289
    %v1322 = vunpack.c.l.b16 %v1290
    %v1323 = vunpack.c.l.b16 %v1291
    %v1324 = vunpack.c.l.b16 %v1292
    %v1325 = vunpack.c.l.b16 %v1293
    %v1326 = vunpack.c.l.b16 %v1294
    %v1327 = vpack.c.b16 %v1312, %v1311
    %v1328 = vpack.c.b16 %v1314, %v1313
    %v1329 = vpack.c.b16 %v1316, %v1315
    %v1330 = vpack.c.b16 %v1318, %v1317
    %v1331 = vpack.c.b16 %v1320, %v1319
    %v1332 = vpack.c.b16 %v1322, %v1321
    %v1333 = vpack.c.b16 %v1324, %v1323
    %v1334 = vpack.c.b16 %v1326, %v1325
    %1343 = vmatpush.bf16.msra.mxu0 %v1334
    %1344 = vmatpush.bf16.msra.mxu0 %v1333
    %1345 = vmatpush.bf16.msra.mxu0 %v1332
    %1346 = vmatpush.bf16.msra.mxu0 %v1331
    %1347 = vmatpush.bf16.msra.mxu0 %v1330
    %1348 = vmatpush.bf16.msra.mxu0 %v1329
    %1349 = vmatpush.bf16.msra.mxu0 %v1328
    %1350 = vmatpush.bf16.msra.mxu0 %v1327
    %1351 = vmatmul.bf16.gmra.mxu0 %v1271
    %v1352 = vpop.f32.mrf.mxu0
    %v1353 = vadd.f32 0.0, %v1352
    %v1354 = vpop.f32.mrf.mxu0
    %v1355 = vadd.f32 0.0, %v1354
    %1356 = vmatmul.bf16.gmra.mxu0 %v1272
    %v1357 = vpop.f32.mrf.mxu0
    %v1358 = vadd.f32 0.0, %v1357
    %v1359 = vpop.f32.mrf.mxu0
    %v1360 = vadd.f32 0.0, %v1359
    %1361 = vmatmul.bf16.gmra.mxu0 %v1273
    %v1362 = vpop.f32.mrf.mxu0
    %v1363 = vadd.f32 0.0, %v1362
    %v1364 = vpop.f32.mrf.mxu0
    %v1365 = vadd.f32 0.0, %v1364
    %1366 = vmatmul.bf16.gmra.mxu0 %v1274
    %v1367 = vpop.f32.mrf.mxu0
    %v1368 = vadd.f32 0.0, %v1367
    %v1369 = vpop.f32.mrf.mxu0
    %v1370 = vadd.f32 0.0, %v1369
    %1371 = vmatmul.bf16.gmra.mxu0 %v1275
    %v1372 = vpop.f32.mrf.mxu0
    %v1373 = vadd.f32 0.0, %v1372
    %v1374 = vpop.f32.mrf.mxu0
    %v1375 = vadd.f32 0.0, %v1374
    %1376 = vmatmul.bf16.gmra.mxu0 %v1276
    %v1377 = vpop.f32.mrf.mxu0
    %v1378 = vadd.f32 0.0, %v1377
    %v1379 = vpop.f32.mrf.mxu0
    %v1380 = vadd.f32 0.0, %v1379
    %1381 = vmatmul.bf16.gmra.mxu0 %v1277
    %v1382 = vpop.f32.mrf.mxu0
    %v1383 = vadd.f32 0.0, %v1382
    %v1384 = vpop.f32.mrf.mxu0
    %v1385 = vadd.f32 0.0, %v1384
    %1386 = vmatmul.bf16.gmra.mxu0 %v1278
    %v1387 = vpop.f32.mrf.mxu0
    %v1388 = vadd.f32 0.0, %v1387
    %v1389 = vpop.f32.mrf.mxu0
    %v1390 = vadd.f32 0.0, %v1389
    %1391 = vdwg.mxu0
    %v1392 = vadd.f32 %v1142, %v1353
    %v1393 = vadd.f32 %v1143, %v1355
    %v1394 = vadd.f32 %v1144, %v1358
    %v1395 = vadd.f32 %v1145, %v1360
    %v1396 = vadd.f32 %v1146, %v1363
    %v1397 = vadd.f32 %v1147, %v1365
    %v1398 = vadd.f32 %v1148, %v1368
    %v1399 = vadd.f32 %v1149, %v1370
    %v1400 = vadd.f32 %v1150, %v1373
    %v1401 = vadd.f32 %v1151, %v1375
    %v1402 = vadd.f32 %v1152, %v1378
    %v1403 = vadd.f32 %v1153, %v1380
    %v1404 = vadd.f32 %v1154, %v1383
    %v1405 = vadd.f32 %v1155, %v1385
    %v1406 = vadd.f32 %v1156, %v1388
    %v1407 = vadd.f32 %v1157, %v1390
    %v1408 = vld [vmem:[%s4 + $0x100] sm:$0xf]
    %v1409 = vld [vmem:[%s4 + $0x104] sm:$0xf]
    %v1410 = vld [vmem:[%s4 + $0x108] sm:$0xf]
    %v1411 = vld [vmem:[%s4 + $0x10c] sm:$0xf]
    %v1412 = vld [vmem:[%s4 + $0x110] sm:$0xf]
    %v1413 = vld [vmem:[%s4 + $0x114] sm:$0xf]
    %v1414 = vld [vmem:[%s4 + $0x118] sm:$0xf]
    %v1415 = vld [vmem:[%s4 + $0x11c] sm:$0xf]
    %v1416 = vld [vmem:[%s4 + $0x120] sm:$0xf]
    %v1417 = vld [vmem:[%s4 + $0x124] sm:$0xf]
    %v1418 = vld [vmem:[%s4 + $0x128] sm:$0xf]
    %v1419 = vld [vmem:[%s4 + $0x12c] sm:$0xf]
    %v1420 = vld [vmem:[%s4 + $0x130] sm:$0xf]
    %v1421 = vld [vmem:[%s4 + $0x134] sm:$0xf]
    %v1422 = vld [vmem:[%s4 + $0x138] sm:$0xf]
    %v1423 = vld [vmem:[%s4 + $0x13c] sm:$0xf]
    %v1440 = vunpack.c.l.b16 %v1408
    %v1441 = vunpack.c.l.b16 %v1409
    %v1442 = vunpack.c.l.b16 %v1410
    %v1443 = vunpack.c.l.b16 %v1411
    %v1444 = vunpack.c.l.b16 %v1412
    %v1445 = vunpack.c.l.b16 %v1413
    %v1446 = vunpack.c.l.b16 %v1414
    %v1447 = vunpack.c.l.b16 %v1415
    %v1448 = vunpack.c.l.b16 %v1416
    %v1449 = vunpack.c.l.b16 %v1417
    %v1450 = vunpack.c.l.b16 %v1418
    %v1451 = vunpack.c.l.b16 %v1419
    %v1452 = vunpack.c.l.b16 %v1420
    %v1453 = vunpack.c.l.b16 %v1421
    %v1454 = vunpack.c.l.b16 %v1422
    %v1455 = vunpack.c.l.b16 %v1423
    %v1456 = vpack.c.b16 %v1441, %v1440
    %v1457 = vpack.c.b16 %v1443, %v1442
    %v1458 = vpack.c.b16 %v1445, %v1444
    %v1459 = vpack.c.b16 %v1447, %v1446
    %v1460 = vpack.c.b16 %v1449, %v1448
    %v1461 = vpack.c.b16 %v1451, %v1450
    %v1462 = vpack.c.b16 %v1453, %v1452
    %v1463 = vpack.c.b16 %v1455, %v1454
    %1472 = vmatpush.bf16.msra.mxu0 %v439
    %1473 = vmatpush.bf16.msra.mxu0 %v438
    %1474 = vmatpush.bf16.msra.mxu0 %v437
    %1475 = vmatpush.bf16.msra.mxu0 %v436
    %1476 = vmatpush.bf16.msra.mxu0 %v435
    %1477 = vmatpush.bf16.msra.mxu0 %v434
    %1478 = vmatpush.bf16.msra.mxu0 %v433
    %1479 = vmatpush.bf16.msra.mxu0 %v432
    %1480 = vmatmul.bf16.gmra.mxu0 %v1456
    %v1481 = vpop.f32.mrf.mxu0
    %v1482 = vadd.f32 0.0, %v1481
    %v1483 = vpop.f32.mrf.mxu0
    %v1484 = vadd.f32 0.0, %v1483
    %1485 = vmatmul.bf16.gmra.mxu0 %v1457
    %v1486 = vpop.f32.mrf.mxu0
    %v1487 = vadd.f32 0.0, %v1486
    %v1488 = vpop.f32.mrf.mxu0
    %v1489 = vadd.f32 0.0, %v1488
    %1490 = vmatmul.bf16.gmra.mxu0 %v1458
    %v1491 = vpop.f32.mrf.mxu0
    %v1492 = vadd.f32 0.0, %v1491
    %v1493 = vpop.f32.mrf.mxu0
    %v1494 = vadd.f32 0.0, %v1493
    %1495 = vmatmul.bf16.gmra.mxu0 %v1459
    %v1496 = vpop.f32.mrf.mxu0
    %v1497 = vadd.f32 0.0, %v1496
    %v1498 = vpop.f32.mrf.mxu0
    %v1499 = vadd.f32 0.0, %v1498
    %1500 = vmatmul.bf16.gmra.mxu0 %v1460
    %v1501 = vpop.f32.mrf.mxu0
    %v1502 = vadd.f32 0.0, %v1501
    %v1503 = vpop.f32.mrf.mxu0
    %v1504 = vadd.f32 0.0, %v1503
    %1505 = vmatmul.bf16.gmra.mxu0 %v1461
    %v1506 = vpop.f32.mrf.mxu0
    %v1507 = vadd.f32 0.0, %v1506
    %v1508 = vpop.f32.mrf.mxu0
    %v1509 = vadd.f32 0.0, %v1508
    %1510 = vmatmul.bf16.gmra.mxu0 %v1462
    %v1511 = vpop.f32.mrf.mxu0
    %v1512 = vadd.f32 0.0, %v1511
    %v1513 = vpop.f32.mrf.mxu0
    %v1514 = vadd.f32 0.0, %v1513
    %1515 = vmatmul.bf16.gmra.mxu0 %v1463
    %v1516 = vpop.f32.mrf.mxu0
    %v1517 = vadd.f32 0.0, %v1516
    %v1518 = vpop.f32.mrf.mxu0
    %v1519 = vadd.f32 0.0, %v1518
    %1520 = vdwg.mxu0
    %v1521 = vpack.c.bf16 %v1484, %v1482
    %v1522 = vpack.c.bf16 %v1489, %v1487
    %v1523 = vpack.c.bf16 %v1494, %v1492
    %v1524 = vpack.c.bf16 %v1499, %v1497
    %v1525 = vpack.c.bf16 %v1504, %v1502
    %v1526 = vpack.c.bf16 %v1509, %v1507
    %v1527 = vpack.c.bf16 %v1514, %v1512
    %v1528 = vpack.c.bf16 %v1519, %v1517
    %v1529 = vld [vmem:[%s5 + $0x100] sm:$0xf]
    %v1530 = vld [vmem:[%s5 + $0x104] sm:$0xf]
    %v1531 = vld [vmem:[%s5 + $0x108] sm:$0xf]
    %v1532 = vld [vmem:[%s5 + $0x10c] sm:$0xf]
    %v1533 = vld [vmem:[%s5 + $0x110] sm:$0xf]
    %v1534 = vld [vmem:[%s5 + $0x114] sm:$0xf]
    %v1535 = vld [vmem:[%s5 + $0x118] sm:$0xf]
    %v1536 = vld [vmem:[%s5 + $0x11c] sm:$0xf]
    %v1537 = vld [vmem:[%s5 + $0x120] sm:$0xf]
    %v1538 = vld [vmem:[%s5 + $0x124] sm:$0xf]
    %v1539 = vld [vmem:[%s5 + $0x128] sm:$0xf]
    %v1540 = vld [vmem:[%s5 + $0x12c] sm:$0xf]
    %v1541 = vld [vmem:[%s5 + $0x130] sm:$0xf]
    %v1542 = vld [vmem:[%s5 + $0x134] sm:$0xf]
    %v1543 = vld [vmem:[%s5 + $0x138] sm:$0xf]
    %v1544 = vld [vmem:[%s5 + $0x13c] sm:$0xf]
    %v1561 = vunpack.c.l.b16 %v1529
    %v1562 = vunpack.c.l.b16 %v1530
    %v1563 = vunpack.c.l.b16 %v1531
    %v1564 = vunpack.c.l.b16 %v1532
    %v1565 = vunpack.c.l.b16 %v1533
    %v1566 = vunpack.c.l.b16 %v1534
    %v1567 = vunpack.c.l.b16 %v1535
    %v1568 = vunpack.c.l.b16 %v1536
    %v1569 = vunpack.c.l.b16 %v1537
    %v1570 = vunpack.c.l.b16 %v1538
    %v1571 = vunpack.c.l.b16 %v1539
    %v1572 = vunpack.c.l.b16 %v1540
    %v1573 = vunpack.c.l.b16 %v1541
    %v1574 = vunpack.c.l.b16 %v1542
    %v1575 = vunpack.c.l.b16 %v1543
    %v1576 = vunpack.c.l.b16 %v1544
    %v1577 = vpack.c.b16 %v1562, %v1561
    %v1578 = vpack.c.b16 %v1564, %v1563
    %v1579 = vpack.c.b16 %v1566, %v1565
    %v1580 = vpack.c.b16 %v1568, %v1567
    %v1581 = vpack.c.b16 %v1570, %v1569
    %v1582 = vpack.c.b16 %v1572, %v1571
    %v1583 = vpack.c.b16 %v1574, %v1573
    %v1584 = vpack.c.b16 %v1576, %v1575
    %1593 = vmatpush.bf16.msra.mxu0 %v1584
    %1594 = vmatpush.bf16.msra.mxu0 %v1583
    %1595 = vmatpush.bf16.msra.mxu0 %v1582
    %1596 = vmatpush.bf16.msra.mxu0 %v1581
    %1597 = vmatpush.bf16.msra.mxu0 %v1580
    %1598 = vmatpush.bf16.msra.mxu0 %v1579
    %1599 = vmatpush.bf16.msra.mxu0 %v1578
    %1600 = vmatpush.bf16.msra.mxu0 %v1577
    %1601 = vmatmul.bf16.gmra.mxu0 %v1521
    %v1602 = vpop.f32.mrf.mxu0
    %v1603 = vadd.f32 0.0, %v1602
    %v1604 = vpop.f32.mrf.mxu0
    %v1605 = vadd.f32 0.0, %v1604
    %1606 = vmatmul.bf16.gmra.mxu0 %v1522
    %v1607 = vpop.f32.mrf.mxu0
    %v1608 = vadd.f32 0.0, %v1607
    %v1609 = vpop.f32.mrf.mxu0
    %v1610 = vadd.f32 0.0, %v1609
    %1611 = vmatmul.bf16.gmra.mxu0 %v1523
    %v1612 = vpop.f32.mrf.mxu0
    %v1613 = vadd.f32 0.0, %v1612
    %v1614 = vpop.f32.mrf.mxu0
    %v1615 = vadd.f32 0.0, %v1614
    %1616 = vmatmul.bf16.gmra.mxu0 %v1524
    %v1617 = vpop.f32.mrf.mxu0
    %v1618 = vadd.f32 0.0, %v1617
    %v1619 = vpop.f32.mrf.mxu0
    %v1620 = vadd.f32 0.0, %v1619
    %1621 = vmatmul.bf16.gmra.mxu0 %v1525
    %v1622 = vpop.f32.mrf.mxu0
    %v1623 = vadd.f32 0.0, %v1622
    %v1624 = vpop.f32.mrf.mxu0
    %v1625 = vadd.f32 0.0, %v1624
    %1626 = vmatmul.bf16.gmra.mxu0 %v1526
    %v1627 = vpop.f32.mrf.mxu0
    %v1628 = vadd.f32 0.0, %v1627
    %v1629 = vpop.f32.mrf.mxu0
    %v1630 = vadd.f32 0.0, %v1629
    %1631 = vmatmul.bf16.gmra.mxu0 %v1527
    %v1632 = vpop.f32.mrf.mxu0
    %v1633 = vadd.f32 0.0, %v1632
    %v1634 = vpop.f32.mrf.mxu0
    %v1635 = vadd.f32 0.0, %v1634
    %1636 = vmatmul.bf16.gmra.mxu0 %v1528
    %v1637 = vpop.f32.mrf.mxu0
    %v1638 = vadd.f32 0.0, %v1637
    %v1639 = vpop.f32.mrf.mxu0
    %v1640 = vadd.f32 0.0, %v1639
    %1641 = vdwg.mxu0
    %v1642 = vadd.f32 %v1392, %v1603
    %v1643 = vadd.f32 %v1393, %v1605
    %v1644 = vadd.f32 %v1394, %v1608
    %v1645 = vadd.f32 %v1395, %v1610
    %v1646 = vadd.f32 %v1396, %v1613
    %v1647 = vadd.f32 %v1397, %v1615
    %v1648 = vadd.f32 %v1398, %v1618
    %v1649 = vadd.f32 %v1399, %v1620
    %v1650 = vadd.f32 %v1400, %v1623
    %v1651 = vadd.f32 %v1401, %v1625
    %v1652 = vadd.f32 %v1402, %v1628
    %v1653 = vadd.f32 %v1403, %v1630
    %v1654 = vadd.f32 %v1404, %v1633
    %v1655 = vadd.f32 %v1405, %v1635
    %v1656 = vadd.f32 %v1406, %v1638
    %v1657 = vadd.f32 %v1407, %v1640
    %v1658 = vld [vmem:[%s4 + $0x140] sm:$0xf]
    %v1659 = vld [vmem:[%s4 + $0x144] sm:$0xf]
    %v1660 = vld [vmem:[%s4 + $0x148] sm:$0xf]
    %v1661 = vld [vmem:[%s4 + $0x14c] sm:$0xf]
    %v1662 = vld [vmem:[%s4 + $0x150] sm:$0xf]
    %v1663 = vld [vmem:[%s4 + $0x154] sm:$0xf]
    %v1664 = vld [vmem:[%s4 + $0x158] sm:$0xf]
    %v1665 = vld [vmem:[%s4 + $0x15c] sm:$0xf]
    %v1666 = vld [vmem:[%s4 + $0x160] sm:$0xf]
    %v1667 = vld [vmem:[%s4 + $0x164] sm:$0xf]
    %v1668 = vld [vmem:[%s4 + $0x168] sm:$0xf]
    %v1669 = vld [vmem:[%s4 + $0x16c] sm:$0xf]
    %v1670 = vld [vmem:[%s4 + $0x170] sm:$0xf]
    %v1671 = vld [vmem:[%s4 + $0x174] sm:$0xf]
    %v1672 = vld [vmem:[%s4 + $0x178] sm:$0xf]
    %v1673 = vld [vmem:[%s4 + $0x17c] sm:$0xf]
    %v1690 = vunpack.c.l.b16 %v1658
    %v1691 = vunpack.c.l.b16 %v1659
    %v1692 = vunpack.c.l.b16 %v1660
    %v1693 = vunpack.c.l.b16 %v1661
    %v1694 = vunpack.c.l.b16 %v1662
    %v1695 = vunpack.c.l.b16 %v1663
    %v1696 = vunpack.c.l.b16 %v1664
    %v1697 = vunpack.c.l.b16 %v1665
    %v1698 = vunpack.c.l.b16 %v1666
    %v1699 = vunpack.c.l.b16 %v1667
    %v1700 = vunpack.c.l.b16 %v1668
    %v1701 = vunpack.c.l.b16 %v1669
    %v1702 = vunpack.c.l.b16 %v1670
    %v1703 = vunpack.c.l.b16 %v1671
    %v1704 = vunpack.c.l.b16 %v1672
    %v1705 = vunpack.c.l.b16 %v1673
    %v1706 = vpack.c.b16 %v1691, %v1690
    %v1707 = vpack.c.b16 %v1693, %v1692
    %v1708 = vpack.c.b16 %v1695, %v1694
    %v1709 = vpack.c.b16 %v1697, %v1696
    %v1710 = vpack.c.b16 %v1699, %v1698
    %v1711 = vpack.c.b16 %v1701, %v1700
    %v1712 = vpack.c.b16 %v1703, %v1702
    %v1713 = vpack.c.b16 %v1705, %v1704
    %1722 = vmatpush.bf16.msra.mxu0 %v439
    %1723 = vmatpush.bf16.msra.mxu0 %v438
    %1724 = vmatpush.bf16.msra.mxu0 %v437
    %1725 = vmatpush.bf16.msra.mxu0 %v436
    %1726 = vmatpush.bf16.msra.mxu0 %v435
    %1727 = vmatpush.bf16.msra.mxu0 %v434
    %1728 = vmatpush.bf16.msra.mxu0 %v433
    %1729 = vmatpush.bf16.msra.mxu0 %v432
    %1730 = vmatmul.bf16.gmra.mxu0 %v1706
    %v1731 = vpop.f32.mrf.mxu0
    %v1732 = vadd.f32 0.0, %v1731
    %v1733 = vpop.f32.mrf.mxu0
    %v1734 = vadd.f32 0.0, %v1733
    %1735 = vmatmul.bf16.gmra.mxu0 %v1707
    %v1736 = vpop.f32.mrf.mxu0
    %v1737 = vadd.f32 0.0, %v1736
    %v1738 = vpop.f32.mrf.mxu0
    %v1739 = vadd.f32 0.0, %v1738
    %1740 = vmatmul.bf16.gmra.mxu0 %v1708
    %v1741 = vpop.f32.mrf.mxu0
    %v1742 = vadd.f32 0.0, %v1741
    %v1743 = vpop.f32.mrf.mxu0
    %v1744 = vadd.f32 0.0, %v1743
    %1745 = vmatmul.bf16.gmra.mxu0 %v1709
    %v1746 = vpop.f32.mrf.mxu0
    %v1747 = vadd.f32 0.0, %v1746
    %v1748 = vpop.f32.mrf.mxu0
    %v1749 = vadd.f32 0.0, %v1748
    %1750 = vmatmul.bf16.gmra.mxu0 %v1710
    %v1751 = vpop.f32.mrf.mxu0
    %v1752 = vadd.f32 0.0, %v1751
    %v1753 = vpop.f32.mrf.mxu0
    %v1754 = vadd.f32 0.0, %v1753
    %1755 = vmatmul.bf16.gmra.mxu0 %v1711
    %v1756 = vpop.f32.mrf.mxu0
    %v1757 = vadd.f32 0.0, %v1756
    %v1758 = vpop.f32.mrf.mxu0
    %v1759 = vadd.f32 0.0, %v1758
    %1760 = vmatmul.bf16.gmra.mxu0 %v1712
    %v1761 = vpop.f32.mrf.mxu0
    %v1762 = vadd.f32 0.0, %v1761
    %v1763 = vpop.f32.mrf.mxu0
    %v1764 = vadd.f32 0.0, %v1763
    %1765 = vmatmul.bf16.gmra.mxu0 %v1713
    %v1766 = vpop.f32.mrf.mxu0
    %v1767 = vadd.f32 0.0, %v1766
    %v1768 = vpop.f32.mrf.mxu0
    %v1769 = vadd.f32 0.0, %v1768
    %1770 = vdwg.mxu0
    %v1771 = vpack.c.bf16 %v1734, %v1732
    %v1772 = vpack.c.bf16 %v1739, %v1737
    %v1773 = vpack.c.bf16 %v1744, %v1742
    %v1774 = vpack.c.bf16 %v1749, %v1747
    %v1775 = vpack.c.bf16 %v1754, %v1752
    %v1776 = vpack.c.bf16 %v1759, %v1757
    %v1777 = vpack.c.bf16 %v1764, %v1762
    %v1778 = vpack.c.bf16 %v1769, %v1767
    %v1779 = vld [vmem:[%s5 + $0x140] sm:$0xf]
    %v1780 = vld [vmem:[%s5 + $0x144] sm:$0xf]
    %v1781 = vld [vmem:[%s5 + $0x148] sm:$0xf]
    %v1782 = vld [vmem:[%s5 + $0x14c] sm:$0xf]
    %v1783 = vld [vmem:[%s5 + $0x150] sm:$0xf]
    %v1784 = vld [vmem:[%s5 + $0x154] sm:$0xf]
    %v1785 = vld [vmem:[%s5 + $0x158] sm:$0xf]
    %v1786 = vld [vmem:[%s5 + $0x15c] sm:$0xf]
    %v1787 = vld [vmem:[%s5 + $0x160] sm:$0xf]
    %v1788 = vld [vmem:[%s5 + $0x164] sm:$0xf]
    %v1789 = vld [vmem:[%s5 + $0x168] sm:$0xf]
    %v1790 = vld [vmem:[%s5 + $0x16c] sm:$0xf]
    %v1791 = vld [vmem:[%s5 + $0x170] sm:$0xf]
    %v1792 = vld [vmem:[%s5 + $0x174] sm:$0xf]
    %v1793 = vld [vmem:[%s5 + $0x178] sm:$0xf]
    %v1794 = vld [vmem:[%s5 + $0x17c] sm:$0xf]
    %v1811 = vunpack.c.l.b16 %v1779
    %v1812 = vunpack.c.l.b16 %v1780
    %v1813 = vunpack.c.l.b16 %v1781
    %v1814 = vunpack.c.l.b16 %v1782
    %v1815 = vunpack.c.l.b16 %v1783
    %v1816 = vunpack.c.l.b16 %v1784
    %v1817 = vunpack.c.l.b16 %v1785
    %v1818 = vunpack.c.l.b16 %v1786
    %v1819 = vunpack.c.l.b16 %v1787
    %v1820 = vunpack.c.l.b16 %v1788
    %v1821 = vunpack.c.l.b16 %v1789
    %v1822 = vunpack.c.l.b16 %v1790
    %v1823 = vunpack.c.l.b16 %v1791
    %v1824 = vunpack.c.l.b16 %v1792
    %v1825 = vunpack.c.l.b16 %v1793
    %v1826 = vunpack.c.l.b16 %v1794
    %v1827 = vpack.c.b16 %v1812, %v1811
    %v1828 = vpack.c.b16 %v1814, %v1813
    %v1829 = vpack.c.b16 %v1816, %v1815
    %v1830 = vpack.c.b16 %v1818, %v1817
    %v1831 = vpack.c.b16 %v1820, %v1819
    %v1832 = vpack.c.b16 %v1822, %v1821
    %v1833 = vpack.c.b16 %v1824, %v1823
    %v1834 = vpack.c.b16 %v1826, %v1825
    %1843 = vmatpush.bf16.msra.mxu0 %v1834
    %1844 = vmatpush.bf16.msra.mxu0 %v1833
    %1845 = vmatpush.bf16.msra.mxu0 %v1832
    %1846 = vmatpush.bf16.msra.mxu0 %v1831
    %1847 = vmatpush.bf16.msra.mxu0 %v1830
    %1848 = vmatpush.bf16.msra.mxu0 %v1829
    %1849 = vmatpush.bf16.msra.mxu0 %v1828
    %1850 = vmatpush.bf16.msra.mxu0 %v1827
    %1851 = vmatmul.bf16.gmra.mxu0 %v1771
    %v1852 = vpop.f32.mrf.mxu0
    %v1853 = vadd.f32 0.0, %v1852
    %v1854 = vpop.f32.mrf.mxu0
    %v1855 = vadd.f32 0.0, %v1854
    %1856 = vmatmul.bf16.gmra.mxu0 %v1772
    %v1857 = vpop.f32.mrf.mxu0
    %v1858 = vadd.f32 0.0, %v1857
    %v1859 = vpop.f32.mrf.mxu0
    %v1860 = vadd.f32 0.0, %v1859
    %1861 = vmatmul.bf16.gmra.mxu0 %v1773
    %v1862 = vpop.f32.mrf.mxu0
    %v1863 = vadd.f32 0.0, %v1862
    %v1864 = vpop.f32.mrf.mxu0
    %v1865 = vadd.f32 0.0, %v1864
    %1866 = vmatmul.bf16.gmra.mxu0 %v1774
    %v1867 = vpop.f32.mrf.mxu0
    %v1868 = vadd.f32 0.0, %v1867
    %v1869 = vpop.f32.mrf.mxu0
    %v1870 = vadd.f32 0.0, %v1869
    %1871 = vmatmul.bf16.gmra.mxu0 %v1775
    %v1872 = vpop.f32.mrf.mxu0
    %v1873 = vadd.f32 0.0, %v1872
    %v1874 = vpop.f32.mrf.mxu0
    %v1875 = vadd.f32 0.0, %v1874
    %1876 = vmatmul.bf16.gmra.mxu0 %v1776
    %v1877 = vpop.f32.mrf.mxu0
    %v1878 = vadd.f32 0.0, %v1877
    %v1879 = vpop.f32.mrf.mxu0
    %v1880 = vadd.f32 0.0, %v1879
    %1881 = vmatmul.bf16.gmra.mxu0 %v1777
    %v1882 = vpop.f32.mrf.mxu0
    %v1883 = vadd.f32 0.0, %v1882
    %v1884 = vpop.f32.mrf.mxu0
    %v1885 = vadd.f32 0.0, %v1884
    %1886 = vmatmul.bf16.gmra.mxu0 %v1778
    %v1887 = vpop.f32.mrf.mxu0
    %v1888 = vadd.f32 0.0, %v1887
    %v1889 = vpop.f32.mrf.mxu0
    %v1890 = vadd.f32 0.0, %v1889
    %1891 = vdwg.mxu0
    %v1892 = vadd.f32 %v1642, %v1853
    %v1893 = vadd.f32 %v1643, %v1855
    %v1894 = vadd.f32 %v1644, %v1858
    %v1895 = vadd.f32 %v1645, %v1860
    %v1896 = vadd.f32 %v1646, %v1863
    %v1897 = vadd.f32 %v1647, %v1865
    %v1898 = vadd.f32 %v1648, %v1868
    %v1899 = vadd.f32 %v1649, %v1870
    %v1900 = vadd.f32 %v1650, %v1873
    %v1901 = vadd.f32 %v1651, %v1875
    %v1902 = vadd.f32 %v1652, %v1878
    %v1903 = vadd.f32 %v1653, %v1880
    %v1904 = vadd.f32 %v1654, %v1883
    %v1905 = vadd.f32 %v1655, %v1885
    %v1906 = vadd.f32 %v1656, %v1888
    %v1907 = vadd.f32 %v1657, %v1890
    %v1908 = vld [vmem:[%s4 + $0x180] sm:$0xf]
    %v1909 = vld [vmem:[%s4 + $0x184] sm:$0xf]
    %v1910 = vld [vmem:[%s4 + $0x188] sm:$0xf]
    %v1911 = vld [vmem:[%s4 + $0x18c] sm:$0xf]
    %v1912 = vld [vmem:[%s4 + $0x190] sm:$0xf]
    %v1913 = vld [vmem:[%s4 + $0x194] sm:$0xf]
    %v1914 = vld [vmem:[%s4 + $0x198] sm:$0xf]
    %v1915 = vld [vmem:[%s4 + $0x19c] sm:$0xf]
    %v1916 = vld [vmem:[%s4 + $0x1a0] sm:$0xf]
    %v1917 = vld [vmem:[%s4 + $0x1a4] sm:$0xf]
    %v1918 = vld [vmem:[%s4 + $0x1a8] sm:$0xf]
    %v1919 = vld [vmem:[%s4 + $0x1ac] sm:$0xf]
    %v1920 = vld [vmem:[%s4 + $0x1b0] sm:$0xf]
    %v1921 = vld [vmem:[%s4 + $0x1b4] sm:$0xf]
    %v1922 = vld [vmem:[%s4 + $0x1b8] sm:$0xf]
    %v1923 = vld [vmem:[%s4 + $0x1bc] sm:$0xf]
    %v1940 = vunpack.c.l.b16 %v1908
    %v1941 = vunpack.c.l.b16 %v1909
    %v1942 = vunpack.c.l.b16 %v1910
    %v1943 = vunpack.c.l.b16 %v1911
    %v1944 = vunpack.c.l.b16 %v1912
    %v1945 = vunpack.c.l.b16 %v1913
    %v1946 = vunpack.c.l.b16 %v1914
    %v1947 = vunpack.c.l.b16 %v1915
    %v1948 = vunpack.c.l.b16 %v1916
    %v1949 = vunpack.c.l.b16 %v1917
    %v1950 = vunpack.c.l.b16 %v1918
    %v1951 = vunpack.c.l.b16 %v1919
    %v1952 = vunpack.c.l.b16 %v1920
    %v1953 = vunpack.c.l.b16 %v1921
    %v1954 = vunpack.c.l.b16 %v1922
    %v1955 = vunpack.c.l.b16 %v1923
    %v1956 = vpack.c.b16 %v1941, %v1940
    %v1957 = vpack.c.b16 %v1943, %v1942
    %v1958 = vpack.c.b16 %v1945, %v1944
    %v1959 = vpack.c.b16 %v1947, %v1946
    %v1960 = vpack.c.b16 %v1949, %v1948
    %v1961 = vpack.c.b16 %v1951, %v1950
    %v1962 = vpack.c.b16 %v1953, %v1952
    %v1963 = vpack.c.b16 %v1955, %v1954
    %1972 = vmatpush.bf16.msra.mxu0 %v439
    %1973 = vmatpush.bf16.msra.mxu0 %v438
    %1974 = vmatpush.bf16.msra.mxu0 %v437
    %1975 = vmatpush.bf16.msra.mxu0 %v436
    %1976 = vmatpush.bf16.msra.mxu0 %v435
    %1977 = vmatpush.bf16.msra.mxu0 %v434
    %1978 = vmatpush.bf16.msra.mxu0 %v433
    %1979 = vmatpush.bf16.msra.mxu0 %v432
    %1980 = vmatmul.bf16.gmra.mxu0 %v1956
    %v1981 = vpop.f32.mrf.mxu0
    %v1982 = vadd.f32 0.0, %v1981
    %v1983 = vpop.f32.mrf.mxu0
    %v1984 = vadd.f32 0.0, %v1983
    %1985 = vmatmul.bf16.gmra.mxu0 %v1957
    %v1986 = vpop.f32.mrf.mxu0
    %v1987 = vadd.f32 0.0, %v1986
    %v1988 = vpop.f32.mrf.mxu0
    %v1989 = vadd.f32 0.0, %v1988
    %1990 = vmatmul.bf16.gmra.mxu0 %v1958
    %v1991 = vpop.f32.mrf.mxu0
    %v1992 = vadd.f32 0.0, %v1991
    %v1993 = vpop.f32.mrf.mxu0
    %v1994 = vadd.f32 0.0, %v1993
    %1995 = vmatmul.bf16.gmra.mxu0 %v1959
    %v1996 = vpop.f32.mrf.mxu0
    %v1997 = vadd.f32 0.0, %v1996
    %v1998 = vpop.f32.mrf.mxu0
    %v1999 = vadd.f32 0.0, %v1998
    %2000 = vmatmul.bf16.gmra.mxu0 %v1960
    %v2001 = vpop.f32.mrf.mxu0
    %v2002 = vadd.f32 0.0, %v2001
    %v2003 = vpop.f32.mrf.mxu0
    %v2004 = vadd.f32 0.0, %v2003
    %2005 = vmatmul.bf16.gmra.mxu0 %v1961
    %v2006 = vpop.f32.mrf.mxu0
    %v2007 = vadd.f32 0.0, %v2006
    %v2008 = vpop.f32.mrf.mxu0
    %v2009 = vadd.f32 0.0, %v2008
    %2010 = vmatmul.bf16.gmra.mxu0 %v1962
    %v2011 = vpop.f32.mrf.mxu0
    %v2012 = vadd.f32 0.0, %v2011
    %v2013 = vpop.f32.mrf.mxu0
    %v2014 = vadd.f32 0.0, %v2013
    %2015 = vmatmul.bf16.gmra.mxu0 %v1963
    %v2016 = vpop.f32.mrf.mxu0
    %v2017 = vadd.f32 0.0, %v2016
    %v2018 = vpop.f32.mrf.mxu0
    %v2019 = vadd.f32 0.0, %v2018
    %2020 = vdwg.mxu0
    %v2021 = vpack.c.bf16 %v1984, %v1982
    %v2022 = vpack.c.bf16 %v1989, %v1987
    %v2023 = vpack.c.bf16 %v1994, %v1992
    %v2024 = vpack.c.bf16 %v1999, %v1997
    %v2025 = vpack.c.bf16 %v2004, %v2002
    %v2026 = vpack.c.bf16 %v2009, %v2007
    %v2027 = vpack.c.bf16 %v2014, %v2012
    %v2028 = vpack.c.bf16 %v2019, %v2017
    %v2029 = vld [vmem:[%s5 + $0x180] sm:$0xf]
    %v2030 = vld [vmem:[%s5 + $0x184] sm:$0xf]
    %v2031 = vld [vmem:[%s5 + $0x188] sm:$0xf]
    %v2032 = vld [vmem:[%s5 + $0x18c] sm:$0xf]
    %v2033 = vld [vmem:[%s5 + $0x190] sm:$0xf]
    %v2034 = vld [vmem:[%s5 + $0x194] sm:$0xf]
    %v2035 = vld [vmem:[%s5 + $0x198] sm:$0xf]
    %v2036 = vld [vmem:[%s5 + $0x19c] sm:$0xf]
    %v2037 = vld [vmem:[%s5 + $0x1a0] sm:$0xf]
    %v2038 = vld [vmem:[%s5 + $0x1a4] sm:$0xf]
    %v2039 = vld [vmem:[%s5 + $0x1a8] sm:$0xf]
    %v2040 = vld [vmem:[%s5 + $0x1ac] sm:$0xf]
    %v2041 = vld [vmem:[%s5 + $0x1b0] sm:$0xf]
    %v2042 = vld [vmem:[%s5 + $0x1b4] sm:$0xf]
    %v2043 = vld [vmem:[%s5 + $0x1b8] sm:$0xf]
    %v2044 = vld [vmem:[%s5 + $0x1bc] sm:$0xf]
    %v2061 = vunpack.c.l.b16 %v2029
    %v2062 = vunpack.c.l.b16 %v2030
    %v2063 = vunpack.c.l.b16 %v2031
    %v2064 = vunpack.c.l.b16 %v2032
    %v2065 = vunpack.c.l.b16 %v2033
    %v2066 = vunpack.c.l.b16 %v2034
    %v2067 = vunpack.c.l.b16 %v2035
    %v2068 = vunpack.c.l.b16 %v2036
    %v2069 = vunpack.c.l.b16 %v2037
    %v2070 = vunpack.c.l.b16 %v2038
    %v2071 = vunpack.c.l.b16 %v2039
    %v2072 = vunpack.c.l.b16 %v2040
    %v2073 = vunpack.c.l.b16 %v2041
    %v2074 = vunpack.c.l.b16 %v2042
    %v2075 = vunpack.c.l.b16 %v2043
    %v2076 = vunpack.c.l.b16 %v2044
    %v2077 = vpack.c.b16 %v2062, %v2061
    %v2078 = vpack.c.b16 %v2064, %v2063
    %v2079 = vpack.c.b16 %v2066, %v2065
    %v2080 = vpack.c.b16 %v2068, %v2067
    %v2081 = vpack.c.b16 %v2070, %v2069
    %v2082 = vpack.c.b16 %v2072, %v2071
    %v2083 = vpack.c.b16 %v2074, %v2073
    %v2084 = vpack.c.b16 %v2076, %v2075
    %2093 = vmatpush.bf16.msra.mxu0 %v2084
    %2094 = vmatpush.bf16.msra.mxu0 %v2083
    %2095 = vmatpush.bf16.msra.mxu0 %v2082
    %2096 = vmatpush.bf16.msra.mxu0 %v2081
    %2097 = vmatpush.bf16.msra.mxu0 %v2080
    %2098 = vmatpush.bf16.msra.mxu0 %v2079
    %2099 = vmatpush.bf16.msra.mxu0 %v2078
    %2100 = vmatpush.bf16.msra.mxu0 %v2077
    %2101 = vmatmul.bf16.gmra.mxu0 %v2021
    %v2102 = vpop.f32.mrf.mxu0
    %v2103 = vadd.f32 0.0, %v2102
    %v2104 = vpop.f32.mrf.mxu0
    %v2105 = vadd.f32 0.0, %v2104
    %2106 = vmatmul.bf16.gmra.mxu0 %v2022
    %v2107 = vpop.f32.mrf.mxu0
    %v2108 = vadd.f32 0.0, %v2107
    %v2109 = vpop.f32.mrf.mxu0
    %v2110 = vadd.f32 0.0, %v2109
    %2111 = vmatmul.bf16.gmra.mxu0 %v2023
    %v2112 = vpop.f32.mrf.mxu0
    %v2113 = vadd.f32 0.0, %v2112
    %v2114 = vpop.f32.mrf.mxu0
    %v2115 = vadd.f32 0.0, %v2114
    %2116 = vmatmul.bf16.gmra.mxu0 %v2024
    %v2117 = vpop.f32.mrf.mxu0
    %v2118 = vadd.f32 0.0, %v2117
    %v2119 = vpop.f32.mrf.mxu0
    %v2120 = vadd.f32 0.0, %v2119
    %2121 = vmatmul.bf16.gmra.mxu0 %v2025
    %v2122 = vpop.f32.mrf.mxu0
    %v2123 = vadd.f32 0.0, %v2122
    %v2124 = vpop.f32.mrf.mxu0
    %v2125 = vadd.f32 0.0, %v2124
    %2126 = vmatmul.bf16.gmra.mxu0 %v2026
    %v2127 = vpop.f32.mrf.mxu0
    %v2128 = vadd.f32 0.0, %v2127
    %v2129 = vpop.f32.mrf.mxu0
    %v2130 = vadd.f32 0.0, %v2129
    %2131 = vmatmul.bf16.gmra.mxu0 %v2027
    %v2132 = vpop.f32.mrf.mxu0
    %v2133 = vadd.f32 0.0, %v2132
    %v2134 = vpop.f32.mrf.mxu0
    %v2135 = vadd.f32 0.0, %v2134
    %2136 = vmatmul.bf16.gmra.mxu0 %v2028
    %v2137 = vpop.f32.mrf.mxu0
    %v2138 = vadd.f32 0.0, %v2137
    %v2139 = vpop.f32.mrf.mxu0
    %v2140 = vadd.f32 0.0, %v2139
    %2141 = vdwg.mxu0
    %v2142 = vadd.f32 %v1892, %v2103
    %v2143 = vadd.f32 %v1893, %v2105
    %v2144 = vadd.f32 %v1894, %v2108
    %v2145 = vadd.f32 %v1895, %v2110
    %v2146 = vadd.f32 %v1896, %v2113
    %v2147 = vadd.f32 %v1897, %v2115
    %v2148 = vadd.f32 %v1898, %v2118
    %v2149 = vadd.f32 %v1899, %v2120
    %v2150 = vadd.f32 %v1900, %v2123
    %v2151 = vadd.f32 %v1901, %v2125
    %v2152 = vadd.f32 %v1902, %v2128
    %v2153 = vadd.f32 %v1903, %v2130
    %v2154 = vadd.f32 %v1904, %v2133
    %v2155 = vadd.f32 %v1905, %v2135
    %v2156 = vadd.f32 %v1906, %v2138
    %v2157 = vadd.f32 %v1907, %v2140
    %v2158 = vld [vmem:[%s4 + $0x1c0] sm:$0xf]
    %v2159 = vld [vmem:[%s4 + $0x1c4] sm:$0xf]
    %v2160 = vld [vmem:[%s4 + $0x1c8] sm:$0xf]
    %v2161 = vld [vmem:[%s4 + $0x1cc] sm:$0xf]
    %v2162 = vld [vmem:[%s4 + $0x1d0] sm:$0xf]
    %v2163 = vld [vmem:[%s4 + $0x1d4] sm:$0xf]
    %v2164 = vld [vmem:[%s4 + $0x1d8] sm:$0xf]
    %v2165 = vld [vmem:[%s4 + $0x1dc] sm:$0xf]
    %v2166 = vld [vmem:[%s4 + $0x1e0] sm:$0xf]
    %v2167 = vld [vmem:[%s4 + $0x1e4] sm:$0xf]
    %v2168 = vld [vmem:[%s4 + $0x1e8] sm:$0xf]
    %v2169 = vld [vmem:[%s4 + $0x1ec] sm:$0xf]
    %v2170 = vld [vmem:[%s4 + $0x1f0] sm:$0xf]
    %v2171 = vld [vmem:[%s4 + $0x1f4] sm:$0xf]
    %v2172 = vld [vmem:[%s4 + $0x1f8] sm:$0xf]
    %v2173 = vld [vmem:[%s4 + $0x1fc] sm:$0xf]
    %v2190 = vunpack.c.l.b16 %v2158
    %v2191 = vunpack.c.l.b16 %v2159
    %v2192 = vunpack.c.l.b16 %v2160
    %v2193 = vunpack.c.l.b16 %v2161
    %v2194 = vunpack.c.l.b16 %v2162
    %v2195 = vunpack.c.l.b16 %v2163
    %v2196 = vunpack.c.l.b16 %v2164
    %v2197 = vunpack.c.l.b16 %v2165
    %v2198 = vunpack.c.l.b16 %v2166
    %v2199 = vunpack.c.l.b16 %v2167
    %v2200 = vunpack.c.l.b16 %v2168
    %v2201 = vunpack.c.l.b16 %v2169
    %v2202 = vunpack.c.l.b16 %v2170
    %v2203 = vunpack.c.l.b16 %v2171
    %v2204 = vunpack.c.l.b16 %v2172
    %v2205 = vunpack.c.l.b16 %v2173
    %v2206 = vpack.c.b16 %v2191, %v2190
    %v2207 = vpack.c.b16 %v2193, %v2192
    %v2208 = vpack.c.b16 %v2195, %v2194
    %v2209 = vpack.c.b16 %v2197, %v2196
    %v2210 = vpack.c.b16 %v2199, %v2198
    %v2211 = vpack.c.b16 %v2201, %v2200
    %v2212 = vpack.c.b16 %v2203, %v2202
    %v2213 = vpack.c.b16 %v2205, %v2204
    %2222 = vmatpush.bf16.msra.mxu0 %v439
    %2223 = vmatpush.bf16.msra.mxu0 %v438
    %2224 = vmatpush.bf16.msra.mxu0 %v437
    %2225 = vmatpush.bf16.msra.mxu0 %v436
    %2226 = vmatpush.bf16.msra.mxu0 %v435
    %2227 = vmatpush.bf16.msra.mxu0 %v434
    %2228 = vmatpush.bf16.msra.mxu0 %v433
    %2229 = vmatpush.bf16.msra.mxu0 %v432
    %2230 = vmatmul.bf16.gmra.mxu0 %v2206
    %v2231 = vpop.f32.mrf.mxu0
    %v2232 = vadd.f32 0.0, %v2231
    %v2233 = vpop.f32.mrf.mxu0
    %v2234 = vadd.f32 0.0, %v2233
    %2235 = vmatmul.bf16.gmra.mxu0 %v2207
    %v2236 = vpop.f32.mrf.mxu0
    %v2237 = vadd.f32 0.0, %v2236
    %v2238 = vpop.f32.mrf.mxu0
    %v2239 = vadd.f32 0.0, %v2238
    %2240 = vmatmul.bf16.gmra.mxu0 %v2208
    %v2241 = vpop.f32.mrf.mxu0
    %v2242 = vadd.f32 0.0, %v2241
    %v2243 = vpop.f32.mrf.mxu0
    %v2244 = vadd.f32 0.0, %v2243
    %2245 = vmatmul.bf16.gmra.mxu0 %v2209
    %v2246 = vpop.f32.mrf.mxu0
    %v2247 = vadd.f32 0.0, %v2246
    %v2248 = vpop.f32.mrf.mxu0
    %v2249 = vadd.f32 0.0, %v2248
    %2250 = vmatmul.bf16.gmra.mxu0 %v2210
    %v2251 = vpop.f32.mrf.mxu0
    %v2252 = vadd.f32 0.0, %v2251
    %v2253 = vpop.f32.mrf.mxu0
    %v2254 = vadd.f32 0.0, %v2253
    %2255 = vmatmul.bf16.gmra.mxu0 %v2211
    %v2256 = vpop.f32.mrf.mxu0
    %v2257 = vadd.f32 0.0, %v2256
    %v2258 = vpop.f32.mrf.mxu0
    %v2259 = vadd.f32 0.0, %v2258
    %2260 = vmatmul.bf16.gmra.mxu0 %v2212
    %v2261 = vpop.f32.mrf.mxu0
    %v2262 = vadd.f32 0.0, %v2261
    %v2263 = vpop.f32.mrf.mxu0
    %v2264 = vadd.f32 0.0, %v2263
    %2265 = vmatmul.bf16.gmra.mxu0 %v2213
    %v2266 = vpop.f32.mrf.mxu0
    %v2267 = vadd.f32 0.0, %v2266
    %v2268 = vpop.f32.mrf.mxu0
    %v2269 = vadd.f32 0.0, %v2268
    %2270 = vdwg.mxu0
    %v2271 = vpack.c.bf16 %v2234, %v2232
    %v2272 = vpack.c.bf16 %v2239, %v2237
    %v2273 = vpack.c.bf16 %v2244, %v2242
    %v2274 = vpack.c.bf16 %v2249, %v2247
    %v2275 = vpack.c.bf16 %v2254, %v2252
    %v2276 = vpack.c.bf16 %v2259, %v2257
    %v2277 = vpack.c.bf16 %v2264, %v2262
    %v2278 = vpack.c.bf16 %v2269, %v2267
    %v2279 = vld [vmem:[%s5 + $0x1c0] sm:$0xf]
    %v2280 = vld [vmem:[%s5 + $0x1c4] sm:$0xf]
    %v2281 = vld [vmem:[%s5 + $0x1c8] sm:$0xf]
    %v2282 = vld [vmem:[%s5 + $0x1cc] sm:$0xf]
    %v2283 = vld [vmem:[%s5 + $0x1d0] sm:$0xf]
    %v2284 = vld [vmem:[%s5 + $0x1d4] sm:$0xf]
    %v2285 = vld [vmem:[%s5 + $0x1d8] sm:$0xf]
    %v2286 = vld [vmem:[%s5 + $0x1dc] sm:$0xf]
    %v2287 = vld [vmem:[%s5 + $0x1e0] sm:$0xf]
    %v2288 = vld [vmem:[%s5 + $0x1e4] sm:$0xf]
    %v2289 = vld [vmem:[%s5 + $0x1e8] sm:$0xf]
    %v2290 = vld [vmem:[%s5 + $0x1ec] sm:$0xf]
    %v2291 = vld [vmem:[%s5 + $0x1f0] sm:$0xf]
    %v2292 = vld [vmem:[%s5 + $0x1f4] sm:$0xf]
    %v2293 = vld [vmem:[%s5 + $0x1f8] sm:$0xf]
    %v2294 = vld [vmem:[%s5 + $0x1fc] sm:$0xf]
    %v2311 = vunpack.c.l.b16 %v2279
    %v2312 = vunpack.c.l.b16 %v2280
    %v2313 = vunpack.c.l.b16 %v2281
    %v2314 = vunpack.c.l.b16 %v2282
    %v2315 = vunpack.c.l.b16 %v2283
    %v2316 = vunpack.c.l.b16 %v2284
    %v2317 = vunpack.c.l.b16 %v2285
    %v2318 = vunpack.c.l.b16 %v2286
    %v2319 = vunpack.c.l.b16 %v2287
    %v2320 = vunpack.c.l.b16 %v2288
    %v2321 = vunpack.c.l.b16 %v2289
    %v2322 = vunpack.c.l.b16 %v2290
    %v2323 = vunpack.c.l.b16 %v2291
    %v2324 = vunpack.c.l.b16 %v2292
    %v2325 = vunpack.c.l.b16 %v2293
    %v2326 = vunpack.c.l.b16 %v2294
    %v2327 = vpack.c.b16 %v2312, %v2311
    %v2328 = vpack.c.b16 %v2314, %v2313
    %v2329 = vpack.c.b16 %v2316, %v2315
    %v2330 = vpack.c.b16 %v2318, %v2317
    %v2331 = vpack.c.b16 %v2320, %v2319
    %v2332 = vpack.c.b16 %v2322, %v2321
    %v2333 = vpack.c.b16 %v2324, %v2323
    %v2334 = vpack.c.b16 %v2326, %v2325
    %2343 = vmatpush.bf16.msra.mxu0 %v2334
    %2344 = vmatpush.bf16.msra.mxu0 %v2333
    %2345 = vmatpush.bf16.msra.mxu0 %v2332
    %2346 = vmatpush.bf16.msra.mxu0 %v2331
    %2347 = vmatpush.bf16.msra.mxu0 %v2330
    %2348 = vmatpush.bf16.msra.mxu0 %v2329
    %2349 = vmatpush.bf16.msra.mxu0 %v2328
    %2350 = vmatpush.bf16.msra.mxu0 %v2327
    %2351 = vmatmul.bf16.gmra.mxu0 %v2271
    %v2352 = vpop.f32.mrf.mxu0
    %v2353 = vadd.f32 0.0, %v2352
    %v2354 = vpop.f32.mrf.mxu0
    %v2355 = vadd.f32 0.0, %v2354
    %2356 = vmatmul.bf16.gmra.mxu0 %v2272
    %v2357 = vpop.f32.mrf.mxu0
    %v2358 = vadd.f32 0.0, %v2357
    %v2359 = vpop.f32.mrf.mxu0
    %v2360 = vadd.f32 0.0, %v2359
    %2361 = vmatmul.bf16.gmra.mxu0 %v2273
    %v2362 = vpop.f32.mrf.mxu0
    %v2363 = vadd.f32 0.0, %v2362
    %v2364 = vpop.f32.mrf.mxu0
    %v2365 = vadd.f32 0.0, %v2364
    %2366 = vmatmul.bf16.gmra.mxu0 %v2274
    %v2367 = vpop.f32.mrf.mxu0
    %v2368 = vadd.f32 0.0, %v2367
    %v2369 = vpop.f32.mrf.mxu0
    %v2370 = vadd.f32 0.0, %v2369
    %2371 = vmatmul.bf16.gmra.mxu0 %v2275
    %v2372 = vpop.f32.mrf.mxu0
    %v2373 = vadd.f32 0.0, %v2372
    %v2374 = vpop.f32.mrf.mxu0
    %v2375 = vadd.f32 0.0, %v2374
    %2376 = vmatmul.bf16.gmra.mxu0 %v2276
    %v2377 = vpop.f32.mrf.mxu0
    %v2378 = vadd.f32 0.0, %v2377
    %v2379 = vpop.f32.mrf.mxu0
    %v2380 = vadd.f32 0.0, %v2379
    %2381 = vmatmul.bf16.gmra.mxu0 %v2277
    %v2382 = vpop.f32.mrf.mxu0
    %v2383 = vadd.f32 0.0, %v2382
    %v2384 = vpop.f32.mrf.mxu0
    %v2385 = vadd.f32 0.0, %v2384
    %2386 = vmatmul.bf16.gmra.mxu0 %v2278
    %v2387 = vpop.f32.mrf.mxu0
    %v2388 = vadd.f32 0.0, %v2387
    %v2389 = vpop.f32.mrf.mxu0
    %v2390 = vadd.f32 0.0, %v2389
    %2391 = vdwg.mxu0
    %v2392 = vadd.f32 %v2142, %v2353
    %v2393 = vadd.f32 %v2143, %v2355
    %v2394 = vadd.f32 %v2144, %v2358
    %v2395 = vadd.f32 %v2145, %v2360
    %v2396 = vadd.f32 %v2146, %v2363
    %v2397 = vadd.f32 %v2147, %v2365
    %v2398 = vadd.f32 %v2148, %v2368
    %v2399 = vadd.f32 %v2149, %v2370
    %v2400 = vadd.f32 %v2150, %v2373
    %v2401 = vadd.f32 %v2151, %v2375
    %v2402 = vadd.f32 %v2152, %v2378
    %v2403 = vadd.f32 %v2153, %v2380
    %v2404 = vadd.f32 %v2154, %v2383
    %v2405 = vadd.f32 %v2155, %v2385
    %v2406 = vadd.f32 %v2156, %v2388
    %v2407 = vadd.f32 %v2157, %v2390
    %v2408 = vld [vmem:[%s4 + $0x200] sm:$0xf]
    %v2409 = vld [vmem:[%s4 + $0x204] sm:$0xf]
    %v2410 = vld [vmem:[%s4 + $0x208] sm:$0xf]
    %v2411 = vld [vmem:[%s4 + $0x20c] sm:$0xf]
    %v2412 = vld [vmem:[%s4 + $0x210] sm:$0xf]
    %v2413 = vld [vmem:[%s4 + $0x214] sm:$0xf]
    %v2414 = vld [vmem:[%s4 + $0x218] sm:$0xf]
    %v2415 = vld [vmem:[%s4 + $0x21c] sm:$0xf]
    %v2416 = vld [vmem:[%s4 + $0x220] sm:$0xf]
    %v2417 = vld [vmem:[%s4 + $0x224] sm:$0xf]
    %v2418 = vld [vmem:[%s4 + $0x228] sm:$0xf]
    %v2419 = vld [vmem:[%s4 + $0x22c] sm:$0xf]
    %v2420 = vld [vmem:[%s4 + $0x230] sm:$0xf]
    %v2421 = vld [vmem:[%s4 + $0x234] sm:$0xf]
    %v2422 = vld [vmem:[%s4 + $0x238] sm:$0xf]
    %v2423 = vld [vmem:[%s4 + $0x23c] sm:$0xf]
    %v2440 = vunpack.c.l.b16 %v2408
    %v2441 = vunpack.c.l.b16 %v2409
    %v2442 = vunpack.c.l.b16 %v2410
    %v2443 = vunpack.c.l.b16 %v2411
    %v2444 = vunpack.c.l.b16 %v2412
    %v2445 = vunpack.c.l.b16 %v2413
    %v2446 = vunpack.c.l.b16 %v2414
    %v2447 = vunpack.c.l.b16 %v2415
    %v2448 = vunpack.c.l.b16 %v2416
    %v2449 = vunpack.c.l.b16 %v2417
    %v2450 = vunpack.c.l.b16 %v2418
    %v2451 = vunpack.c.l.b16 %v2419
    %v2452 = vunpack.c.l.b16 %v2420
    %v2453 = vunpack.c.l.b16 %v2421
    %v2454 = vunpack.c.l.b16 %v2422
    %v2455 = vunpack.c.l.b16 %v2423
    %v2456 = vpack.c.b16 %v2441, %v2440
    %v2457 = vpack.c.b16 %v2443, %v2442
    %v2458 = vpack.c.b16 %v2445, %v2444
    %v2459 = vpack.c.b16 %v2447, %v2446
    %v2460 = vpack.c.b16 %v2449, %v2448
    %v2461 = vpack.c.b16 %v2451, %v2450
    %v2462 = vpack.c.b16 %v2453, %v2452
    %v2463 = vpack.c.b16 %v2455, %v2454
    %2472 = vmatpush.bf16.msra.mxu0 %v439
    %2473 = vmatpush.bf16.msra.mxu0 %v438
    %2474 = vmatpush.bf16.msra.mxu0 %v437
    %2475 = vmatpush.bf16.msra.mxu0 %v436
    %2476 = vmatpush.bf16.msra.mxu0 %v435
    %2477 = vmatpush.bf16.msra.mxu0 %v434
    %2478 = vmatpush.bf16.msra.mxu0 %v433
    %2479 = vmatpush.bf16.msra.mxu0 %v432
    %2480 = vmatmul.bf16.gmra.mxu0 %v2456
    %v2481 = vpop.f32.mrf.mxu0
    %v2482 = vadd.f32 0.0, %v2481
    %v2483 = vpop.f32.mrf.mxu0
    %v2484 = vadd.f32 0.0, %v2483
    %2485 = vmatmul.bf16.gmra.mxu0 %v2457
    %v2486 = vpop.f32.mrf.mxu0
    %v2487 = vadd.f32 0.0, %v2486
    %v2488 = vpop.f32.mrf.mxu0
    %v2489 = vadd.f32 0.0, %v2488
    %2490 = vmatmul.bf16.gmra.mxu0 %v2458
    %v2491 = vpop.f32.mrf.mxu0
    %v2492 = vadd.f32 0.0, %v2491
    %v2493 = vpop.f32.mrf.mxu0
    %v2494 = vadd.f32 0.0, %v2493
    %2495 = vmatmul.bf16.gmra.mxu0 %v2459
    %v2496 = vpop.f32.mrf.mxu0
    %v2497 = vadd.f32 0.0, %v2496
    %v2498 = vpop.f32.mrf.mxu0
    %v2499 = vadd.f32 0.0, %v2498
    %2500 = vmatmul.bf16.gmra.mxu0 %v2460
    %v2501 = vpop.f32.mrf.mxu0
    %v2502 = vadd.f32 0.0, %v2501
    %v2503 = vpop.f32.mrf.mxu0
    %v2504 = vadd.f32 0.0, %v2503
    %2505 = vmatmul.bf16.gmra.mxu0 %v2461
    %v2506 = vpop.f32.mrf.mxu0
    %v2507 = vadd.f32 0.0, %v2506
    %v2508 = vpop.f32.mrf.mxu0
    %v2509 = vadd.f32 0.0, %v2508
    %2510 = vmatmul.bf16.gmra.mxu0 %v2462
    %v2511 = vpop.f32.mrf.mxu0
    %v2512 = vadd.f32 0.0, %v2511
    %v2513 = vpop.f32.mrf.mxu0
    %v2514 = vadd.f32 0.0, %v2513
    %2515 = vmatmul.bf16.gmra.mxu0 %v2463
    %v2516 = vpop.f32.mrf.mxu0
    %v2517 = vadd.f32 0.0, %v2516
    %v2518 = vpop.f32.mrf.mxu0
    %v2519 = vadd.f32 0.0, %v2518
    %2520 = vdwg.mxu0
    %v2521 = vpack.c.bf16 %v2484, %v2482
    %v2522 = vpack.c.bf16 %v2489, %v2487
    %v2523 = vpack.c.bf16 %v2494, %v2492
    %v2524 = vpack.c.bf16 %v2499, %v2497
    %v2525 = vpack.c.bf16 %v2504, %v2502
    %v2526 = vpack.c.bf16 %v2509, %v2507
    %v2527 = vpack.c.bf16 %v2514, %v2512
    %v2528 = vpack.c.bf16 %v2519, %v2517
    %v2529 = vld [vmem:[%s5 + $0x200] sm:$0xf]
    %v2530 = vld [vmem:[%s5 + $0x204] sm:$0xf]
    %v2531 = vld [vmem:[%s5 + $0x208] sm:$0xf]
    %v2532 = vld [vmem:[%s5 + $0x20c] sm:$0xf]
    %v2533 = vld [vmem:[%s5 + $0x210] sm:$0xf]
    %v2534 = vld [vmem:[%s5 + $0x214] sm:$0xf]
    %v2535 = vld [vmem:[%s5 + $0x218] sm:$0xf]
    %v2536 = vld [vmem:[%s5 + $0x21c] sm:$0xf]
    %v2537 = vld [vmem:[%s5 + $0x220] sm:$0xf]
    %v2538 = vld [vmem:[%s5 + $0x224] sm:$0xf]
    %v2539 = vld [vmem:[%s5 + $0x228] sm:$0xf]
    %v2540 = vld [vmem:[%s5 + $0x22c] sm:$0xf]
    %v2541 = vld [vmem:[%s5 + $0x230] sm:$0xf]
    %v2542 = vld [vmem:[%s5 + $0x234] sm:$0xf]
    %v2543 = vld [vmem:[%s5 + $0x238] sm:$0xf]
    %v2544 = vld [vmem:[%s5 + $0x23c] sm:$0xf]
    %v2561 = vunpack.c.l.b16 %v2529
    %v2562 = vunpack.c.l.b16 %v2530
    %v2563 = vunpack.c.l.b16 %v2531
    %v2564 = vunpack.c.l.b16 %v2532
    %v2565 = vunpack.c.l.b16 %v2533
    %v2566 = vunpack.c.l.b16 %v2534
    %v2567 = vunpack.c.l.b16 %v2535
    %v2568 = vunpack.c.l.b16 %v2536
    %v2569 = vunpack.c.l.b16 %v2537
    %v2570 = vunpack.c.l.b16 %v2538
    %v2571 = vunpack.c.l.b16 %v2539
    %v2572 = vunpack.c.l.b16 %v2540
    %v2573 = vunpack.c.l.b16 %v2541
    %v2574 = vunpack.c.l.b16 %v2542
    %v2575 = vunpack.c.l.b16 %v2543
    %v2576 = vunpack.c.l.b16 %v2544
    %v2577 = vpack.c.b16 %v2562, %v2561
    %v2578 = vpack.c.b16 %v2564, %v2563
    %v2579 = vpack.c.b16 %v2566, %v2565
    %v2580 = vpack.c.b16 %v2568, %v2567
    %v2581 = vpack.c.b16 %v2570, %v2569
    %v2582 = vpack.c.b16 %v2572, %v2571
    %v2583 = vpack.c.b16 %v2574, %v2573
    %v2584 = vpack.c.b16 %v2576, %v2575
    %2593 = vmatpush.bf16.msra.mxu0 %v2584
    %2594 = vmatpush.bf16.msra.mxu0 %v2583
    %2595 = vmatpush.bf16.msra.mxu0 %v2582
    %2596 = vmatpush.bf16.msra.mxu0 %v2581
    %2597 = vmatpush.bf16.msra.mxu0 %v2580
    %2598 = vmatpush.bf16.msra.mxu0 %v2579
    %2599 = vmatpush.bf16.msra.mxu0 %v2578
    %2600 = vmatpush.bf16.msra.mxu0 %v2577
    %2601 = vmatmul.bf16.gmra.mxu0 %v2521
    %v2602 = vpop.f32.mrf.mxu0
    %v2603 = vadd.f32 0.0, %v2602
    %v2604 = vpop.f32.mrf.mxu0
    %v2605 = vadd.f32 0.0, %v2604
    %2606 = vmatmul.bf16.gmra.mxu0 %v2522
    %v2607 = vpop.f32.mrf.mxu0
    %v2608 = vadd.f32 0.0, %v2607
    %v2609 = vpop.f32.mrf.mxu0
    %v2610 = vadd.f32 0.0, %v2609
    %2611 = vmatmul.bf16.gmra.mxu0 %v2523
    %v2612 = vpop.f32.mrf.mxu0
    %v2613 = vadd.f32 0.0, %v2612
    %v2614 = vpop.f32.mrf.mxu0
    %v2615 = vadd.f32 0.0, %v2614
    %2616 = vmatmul.bf16.gmra.mxu0 %v2524
    %v2617 = vpop.f32.mrf.mxu0
    %v2618 = vadd.f32 0.0, %v2617
    %v2619 = vpop.f32.mrf.mxu0
    %v2620 = vadd.f32 0.0, %v2619
    %2621 = vmatmul.bf16.gmra.mxu0 %v2525
    %v2622 = vpop.f32.mrf.mxu0
    %v2623 = vadd.f32 0.0, %v2622
    %v2624 = vpop.f32.mrf.mxu0
    %v2625 = vadd.f32 0.0, %v2624
    %2626 = vmatmul.bf16.gmra.mxu0 %v2526
    %v2627 = vpop.f32.mrf.mxu0
    %v2628 = vadd.f32 0.0, %v2627
    %v2629 = vpop.f32.mrf.mxu0
    %v2630 = vadd.f32 0.0, %v2629
    %2631 = vmatmul.bf16.gmra.mxu0 %v2527
    %v2632 = vpop.f32.mrf.mxu0
    %v2633 = vadd.f32 0.0, %v2632
    %v2634 = vpop.f32.mrf.mxu0
    %v2635 = vadd.f32 0.0, %v2634
    %2636 = vmatmul.bf16.gmra.mxu0 %v2528
    %v2637 = vpop.f32.mrf.mxu0
    %v2638 = vadd.f32 0.0, %v2637
    %v2639 = vpop.f32.mrf.mxu0
    %v2640 = vadd.f32 0.0, %v2639
    %2641 = vdwg.mxu0
    %v2642 = vadd.f32 %v2392, %v2603
    %v2643 = vadd.f32 %v2393, %v2605
    %v2644 = vadd.f32 %v2394, %v2608
    %v2645 = vadd.f32 %v2395, %v2610
    %v2646 = vadd.f32 %v2396, %v2613
    %v2647 = vadd.f32 %v2397, %v2615
    %v2648 = vadd.f32 %v2398, %v2618
    %v2649 = vadd.f32 %v2399, %v2620
    %v2650 = vadd.f32 %v2400, %v2623
    %v2651 = vadd.f32 %v2401, %v2625
    %v2652 = vadd.f32 %v2402, %v2628
    %v2653 = vadd.f32 %v2403, %v2630
    %v2654 = vadd.f32 %v2404, %v2633
    %v2655 = vadd.f32 %v2405, %v2635
    %v2656 = vadd.f32 %v2406, %v2638
    %v2657 = vadd.f32 %v2407, %v2640
    %v2658 = vld [vmem:[%s6] sm:$0x1]
    %v2660 = vperm.slane %v2658, 0
    %v2662 = vadd.f32 %v2642, %v2660
    %v2663 = vadd.f32 %v2643, %v2660
    %v2664 = vadd.f32 %v2644, %v2660
    %v2665 = vadd.f32 %v2645, %v2660
    %v2666 = vadd.f32 %v2646, %v2660
    %v2667 = vadd.f32 %v2647, %v2660
    %v2668 = vadd.f32 %v2648, %v2660
    %v2669 = vadd.f32 %v2649, %v2660
    %v2670 = vadd.f32 %v2650, %v2660
    %v2671 = vadd.f32 %v2651, %v2660
    %v2672 = vadd.f32 %v2652, %v2660
    %v2673 = vadd.f32 %v2653, %v2660
    %v2674 = vadd.f32 %v2654, %v2660
    %v2675 = vadd.f32 %v2655, %v2660
    %v2676 = vadd.f32 %v2656, %v2660
    %v2677 = vadd.f32 %v2657, %v2660
    %v2678 = vsub.f32 %v2662, %v384
    %v2679 = vsub.f32 %v2663, %v385
    %v2680 = vsub.f32 %v2664, %v386
    %v2681 = vsub.f32 %v2665, %v387
    %v2682 = vsub.f32 %v2666, %v388
    %v2683 = vsub.f32 %v2667, %v389
    %v2684 = vsub.f32 %v2668, %v390
    %v2685 = vsub.f32 %v2669, %v391
    %v2686 = vsub.f32 %v2670, %v392
    %v2687 = vsub.f32 %v2671, %v393
    %v2688 = vsub.f32 %v2672, %v394
    %v2689 = vsub.f32 %v2673, %v395
    %v2690 = vsub.f32 %v2674, %v396
    %v2691 = vsub.f32 %v2675, %v397
    %v2692 = vsub.f32 %v2676, %v398
    %v2693 = vsub.f32 %v2677, %v399
    %v2694 = vmul.f32 %v2678, %v2678
    %v2695 = vmul.f32 %v2679, %v2679
    %v2696 = vmul.f32 %v2680, %v2680
    %v2697 = vmul.f32 %v2681, %v2681
    %v2698 = vmul.f32 %v2682, %v2682
    %v2699 = vmul.f32 %v2683, %v2683
    %v2700 = vmul.f32 %v2684, %v2684
    %v2701 = vmul.f32 %v2685, %v2685
    %v2702 = vmul.f32 %v2686, %v2686
    %v2703 = vmul.f32 %v2687, %v2687
    %v2704 = vmul.f32 %v2688, %v2688
    %v2705 = vmul.f32 %v2689, %v2689
    %v2706 = vmul.f32 %v2690, %v2690
    %v2707 = vmul.f32 %v2691, %v2691
    %v2708 = vmul.f32 %v2692, %v2692
    %v2709 = vmul.f32 %v2693, %v2693
    %v2710 = vadd.f32 %v2694, %v2695
    %v2711 = vadd.f32 %v2710, %v2696
    %v2712 = vadd.f32 %v2711, %v2697
    %v2713 = vadd.f32 %v2712, %v2698
    %v2714 = vadd.f32 %v2713, %v2699
    %v2715 = vadd.f32 %v2714, %v2700
    %v2716 = vadd.f32 %v2715, %v2701
    %v2717 = vadd.f32 %v2716, %v2702
    %v2718 = vadd.f32 %v2717, %v2703
    %v2719 = vadd.f32 %v2718, %v2704
    %v2720 = vadd.f32 %v2719, %v2705
    %v2721 = vadd.f32 %v2720, %v2706
    %v2722 = vadd.f32 %v2721, %v2707
    %v2723 = vadd.f32 %v2722, %v2708
    %v2724 = vadd.f32 %v2723, %v2709
    %2725 = vadd.xlane.f32.xlu0 %v2724
    %v2726 = vpop.xlane.xlu0 %2725
    %v2727 = vrot.slane %v2726, 4
    %v2728 = vadd.f32 %v2726, %v2727
    %v2729 = vrot.slane %v2728, 2
    %v2730 = vadd.f32 %v2728, %v2729
    %v2731 = vrot.slane %v2730, 1
    %v2732 = vadd.f32 %v2730, %v2731
    %s2733 = vtos %v2732
    %s2734 = smul.f32 %s2733, 19.53125
    %s2735 = ssub.f32 %s2734, %s367
    %s2736 = scalar_lea.smem [#allocation2], 0
    %2737 = sst [smem:[%s2736]] %s2735
    // Predicated region
    $region30: #{forward.1} parent=1 // pred_check
      _
    $region31: #{forward.1} parent=1 // pred_check_branch
      %2739 = sbr.rel (0) target = $region33
    $region32: #{forward.1} parent=1 // pred_region
      %2741 = vsyncadd [#allocation3], 0
      %s2743 = sshll.u32 %s7, 4
      %s2744 = int_to_ptr.hbm [resolvable:$true] %s2743
      %2746 = dma.smem_to_hbm [#allocation2], 16, %s2744, [#allocation3]
    $region33: #{forward.1} parent=1 // pred_fallthru
      _
    // Predicated region
    $region34: #{forward.1} parent=1 // pred_check
      _
    $region35: #{forward.1} parent=1 // pred_check_branch
      %2748 = sbr.rel (0) target = $region37
    $region36: #{forward.1} parent=1 // pred_region
      %2750 = dma.done [#allocation3], 16
    $region37: #{forward.1} parent=1 // pred_fallthru
      _
    %2751 = sfence
    %2752 = vsyncpa [#allocation3], 1

</llo_original>
